<compile_context>
chip_gen: v7x
topology: tpu7x:2x2x1
jax: 0.10.0
libtpu: 0.0.40
codegen_flags: <defaults>
</compile_context>

<pallas_src>
import functools

import jax
import jax.numpy as jnp
from jax.experimental import pallas as pl
from jax.experimental.pallas import tpu as pltpu


def _celu(x):
    # torch.nn.CELU(alpha=1): for x>0 exp(min(x,0))-1 == 0 <= x; for x<=0
    # exp(x)-1 >= x.  So max(x, exp(min(x,0))-1) == CELU(x), no select needed.
    return jnp.maximum(x, jnp.exp(jnp.minimum(x, 0.0)) - 1.0)


def _mldf_kernel(wsum_ref, g_ref, c0_ref, c1_ref, c2_ref, b1_ref, w2t_ref,
                 b2_ref, w3_ref, b3_ref, out_ref, *, compute_dtype):
    """One tile of grid points (lane axis): fused density features + MLP + scale.

    Shapes inside the kernel (tn = tile, H = hidden width, cdt = compute dtype):
      g_ref             : (3, tn) f32   grid coordinates, points on lanes
      c0/c1/c2/b1_ref   : (H, 1)  cdt   folded layer-1 columns + bias
      w2t_ref           : (H, H)  cdt   W2^T
      b2_ref            : (H, 1)  f32
      w3_ref            : (H, 1)  cdt   W3 (in, out=1)
      b3_ref            : (1, 1)  f32
      out_ref           : (1, tn) f32   lane-dense output tile
    """
    cdt = compute_dtype
    gx = g_ref[0:1, :]
    gy = g_ref[1:2, :]
    gz = g_ref[2:3, :]
    r = jnp.sqrt(gx * gx + gy * gy + gz * gz) + 1e-3            # (1, tn) f32

    # Synthetic density features (stand-in for density_function.forward),
    # algebraically folded with the first Linear layer:
    #   p = e, dp = -e, lp = e - 2*e/r, zp = e**2   (e = exp(-r))
    #   pp @ W1 = c0*e + c1*(e/r) + c2*e**2
    e = jnp.exp(-r)                                             # (1, tn) f32
    if cdt == jnp.bfloat16:
        # EUP approx reciprocal: its own VLIW slot, accuracy well inside the
        # bf16 budget (r >= 1e-3 by construction).
        eir = e * pl.reciprocal(r, approx=True)
    else:
        # Strict f32 path (v5e): keep the exact divide.
        eir = e / r
    e2 = e * e                                                  # == exp(-2r)

    e_c = e.astype(cdt)
    eir_c = eir.astype(cdt)
    e2_c = e2.astype(cdt)

    # Layer 1 (in=4, folded to 3 terms): broadcast-MAC on the VPU.
    h = (c0_ref[...] * e_c + c1_ref[...] * eir_c + c2_ref[...] * e2_c
         + b1_ref[...])                                         # (H, tn) cdt
    h = _celu(h)

    # Layer 2 (HxH): MXU matmul with f32 accumulation; bias add in f32, then
    # CELU back in the compute dtype.
    h = jnp.dot(w2t_ref[...], h, preferred_element_type=jnp.float32)
    h = _celu((h + b2_ref[...]).astype(cdt))                    # (H, tn) cdt

    # Layer 3 (out=1): multiply + f32 sublane reduce instead of an M=1 matmul.
    df = jnp.sum((w3_ref[...] * h).astype(jnp.float32), axis=0, keepdims=True)
    df = _celu(df + b3_ref[...])                                # (1, tn) f32

    # (w * df).sum(1) == df[:, 0] * w.sum(); w.sum() is a hoisted SMEM scalar.
    out_ref[...] = (df * wsum_ref[0, 0]).astype(out_ref.dtype)


def _device_kind():
    return jax.devices()[0].device_kind.lower()


def _auto_compute_dtype():
    kind = _device_kind()
    # v6e / v7x VPU+EUP are bf16-native; v5e (and older) are not -> keep f32.
    return jnp.bfloat16 if ("v6" in kind or "v7" in kind) else jnp.float32


@functools.partial(jax.jit, static_argnames=("tile_n", "compute_dtype"))
def ml_density_functional(grid_t, w, params, *, tile_n=4096, compute_dtype=None):
    """grid_t: (3, N) f32 grid coords (lane-major), w: (N,) f32 quadrature weights."""
    three, n = grid_t.shape
    assert three == 3
    w1, b1, w2, b2, w3, b3 = params
    f, hdim = w1.shape                                   # (4, H)
    assert f == 4

    cdt = _auto_compute_dtype() if compute_dtype is None else compute_dtype

    # Tile sizing: lane-axis tiles are multiples of 128, clamped so a small N
    # runs as a single tile; large N defaults to 4096-lane tiles so the
    # ~0.35 us/grid-step overhead is amortized (VMEM/tile stays < 1 MiB).
    n_min = pl.cdiv(n, 128) * 128
    tn = max(128, min((tile_n // 128) * 128, n_min))
    n_pad = pl.cdiv(n, tn) * tn
    if n_pad != n:
        # Padded columns produce finite garbage that is sliced off below.
        grid_t = jnp.pad(grid_t, ((0, 0), (0, n_pad - n)), constant_values=1.0)
    num_steps = n_pad // tn

    # Hoisted scalar: (w * df).sum(1) == df[:,0] * w.sum()  (UNPADDED w).
    w_sum = jnp.sum(w).astype(jnp.float32).reshape(1, 1)

    # Fold the synthetic feature structure into layer-1 columns (see kernel).
    c0 = (w1[0, :] - w1[1, :] + w1[2, :]).reshape(hdim, 1).astype(cdt)
    c1 = (-2.0 * w1[2, :]).reshape(hdim, 1).astype(cdt)
    c2 = w1[3, :].reshape(hdim, 1).astype(cdt)
    b1c = b1.reshape(hdim, 1).astype(cdt)
    w2t = w2.T.astype(cdt)                               # (H, H)
    b2c = b2.reshape(hdim, 1).astype(jnp.float32)
    w3c = w3.reshape(hdim, 1).astype(cdt)
    b3c = b3.reshape(1, 1).astype(jnp.float32)

    # v7x has 2 TensorCores: explicitly shard the point axis across them when
    # there are >= 2 tiles; other generations keep plain "parallel".
    if "v7" in _device_kind() and num_steps >= 2:
        dim_sem = (getattr(pltpu, "CORE_PARALLEL", "parallel"),)
    else:
        dim_sem = ("parallel",)

    cost = pl.CostEstimate(
        flops=int(n_pad * (2 * hdim * hdim + 8 * hdim + 32)),
        transcendentals=int(n_pad * (2 * hdim + 4)),
        bytes_accessed=int(16 * n_pad + 4 * (hdim * hdim + 6 * hdim + 2)),
    )

    full = lambda i: (0, 0)
    out = pl.pallas_call(
        functools.partial(_mldf_kernel, compute_dtype=cdt),
        out_shape=jax.ShapeDtypeStruct((1, n_pad), jnp.float32),
        grid=(num_steps,),
        in_specs=[
            pl.BlockSpec(memory_space=pltpu.MemorySpace.SMEM),  # w_sum (1,1)
            pl.BlockSpec((3, tn), lambda i: (0, i)),            # grid tile
            pl.BlockSpec((hdim, 1), full),                      # c0
            pl.BlockSpec((hdim, 1), full),                      # c1
            pl.BlockSpec((hdim, 1), full),                      # c2
            pl.BlockSpec((hdim, 1), full),                      # b1
            pl.BlockSpec((hdim, hdim), full),                   # W2^T
            pl.BlockSpec((hdim, 1), full),                      # b2
            pl.BlockSpec((hdim, 1), full),                      # W3 (in, out)
            pl.BlockSpec((1, 1), full),                         # b3
        ],
        out_specs=pl.BlockSpec((1, tn), lambda i: (0, i)),
        compiler_params=pltpu.CompilerParams(dimension_semantics=dim_sem),
        cost_estimate=cost,
    )(w_sum, grid_t, c0, c1, c2, b1c, w2t, b2c, w3c, b3c)
    return out.reshape(n_pad)[:n]


def init_params(key, architecture):
    """Deterministic init matching nn.Linear shapes; weights stored as (in, out)."""
    params = []
    for i in range(len(architecture) - 1):
        fan_in, fan_out = architecture[i], architecture[i + 1]
        key, kw, kb = jax.random.split(key, 3)
        bound = 1.0 / jnp.sqrt(fan_in)
        wgt = jax.random.uniform(kw, (fan_in, fan_out), jnp.float32, -bound, bound)
        bias = jax.random.uniform(kb, (fan_out,), jnp.float32, -bound, bound)
        params += [wgt, bias]
    return tuple(params)


def reference_forward(grid, w, params):
    """Pure-JAX f32 reference of the module forward (grid is (N, 3))."""
    r = jnp.linalg.norm(grid, axis=1, keepdims=True) + 1e-3     # (N, 1)
    p = jnp.exp(-r)
    dp = -jnp.exp(-r)
    lp = jnp.exp(-r) * (1.0 - 2.0 / r)
    zp = jnp.exp(-2.0 * r)
    pp = jnp.concatenate([p, dp, lp, zp], axis=1)               # (N, 4)

    w1, b1, w2, b2, w3, b3 = params
    hp = jax.lax.Precision.HIGHEST
    h = _celu(jnp.dot(pp, w1, precision=hp) + b1)
    h = _celu(jnp.dot(h, w2, precision=hp) + b2)
    df = _celu(jnp.dot(h, w3, precision=hp) + b3)               # (N, 1)
    # torch: (w * df).sum(1) with w (N,), df (N,1)  ->  df[:,0] * w.sum()
    return df[:, 0] * jnp.sum(w)


if __name__ == "__main__":
    # TODO(synk): generate_lebdenev_grid (Lebedev table file load + numpy
    # Voronoi tesselation) has no Pallas equivalent; grid/weights synthesized.
    # TODO(synk): density_function is an arbitrary external nn.Module in the
    # original; the synthetic analytic stand-in is fused into the kernel.
    N = 1000                    # number of grid points (NOT a tile multiple)
    ARCH = (4, 32, 32, 1)       # 4 stacked density features -> 1

    key = jax.random.PRNGKey(0)
    kgrid, kw, kparams = jax.random.split(key, 3)

    grid_t = jax.random.normal(kgrid, (3, N), jnp.float32)        # (3, N) lane-major
    w = jax.random.uniform(kw, (N,), jnp.float32, 0.01, 1.0)      # quadrature weights
    params = init_params(kparams, ARCH)

    ref = reference_forward(grid_t.T, w, params)
    scale = jnp.max(jnp.abs(ref)) + 1e-6

    def _check(dfi, tol, tag):
        assert dfi.shape == (N,), tag
        err = float(jnp.max(jnp.abs(dfi - ref)) / scale)
        assert err < tol, f"{tag}: normalized max err {err} >= {tol}"

    auto_cdt = _auto_compute_dtype()
    auto_tol = 2.5e-2 if auto_cdt == jnp.bfloat16 else 2e-3

    # 1) Default config: auto compute dtype (bf16 on v6e/v7x, f32 on v5e),
    #    tile auto-clamped to a single 1024-lane tile for this small N.
    dfi = jax.block_until_ready(ml_density_functional(grid_t, w, params))
    _check(dfi, auto_tol, "auto/default-tile")

    # 2) Forced multi-tile path (exercises padding + the pipelined grid loop).
    dfi = jax.block_until_ready(
        ml_density_functional(grid_t, w, params, tile_n=512))
    _check(dfi, auto_tol, "auto/tile512")

    # 3) Strict f32 path (the v5e configuration), multi-tile.
    dfi = jax.block_until_ready(
        ml_density_functional(grid_t, w, params, tile_n=512,
                              compute_dtype=jnp.float32))
    _check(dfi, 2e-3, "f32/tile512")

    print("KERNEL_OK")
</pallas_src>

<mosaic_0001>
module attributes {stable_mosaic.version = 11 : i64} {
  func.func @_mldf_kernel(%arg0: i32, %arg1: memref<1x1xf32, #tpu.memory_space<smem>>, %arg2: memref<3x1024xf32, #tpu.memory_space<vmem>>, %arg3: memref<32x1xf32, #tpu.memory_space<vmem>>, %arg4: memref<32x1xf32, #tpu.memory_space<vmem>>, %arg5: memref<32x1xf32, #tpu.memory_space<vmem>>, %arg6: memref<32x1xf32, #tpu.memory_space<vmem>>, %arg7: memref<32x32xf32, #tpu.memory_space<vmem>>, %arg8: memref<32x1xf32, #tpu.memory_space<vmem>>, %arg9: memref<32x1xf32, #tpu.memory_space<vmem>>, %arg10: memref<1x1xf32, #tpu.memory_space<vmem>>, %arg11: memref<1x1024xf32, #tpu.memory_space<vmem>>) attributes {dimension_semantics = [#tpu.dimension_semantics<parallel>], iteration_bounds = array<i64: 1>, scalar_prefetch = 0 : i64, scratch_operands = 0 : i64, tpu.core_type = #tpu.core_type<tc>, window_params = [{transform_indices = @transform_0, window_bounds = array<i64: 1, 1>}, {transform_indices = @transform_1, window_bounds = array<i64: 3, 1024>}, {pipeline_mode = #tpu.pipeline_mode<synchronous>, transform_indices = @transform_2, window_bounds = array<i64: 32, 1>}, {pipeline_mode = #tpu.pipeline_mode<synchronous>, transform_indices = @transform_3, window_bounds = array<i64: 32, 1>}, {pipeline_mode = #tpu.pipeline_mode<synchronous>, transform_indices = @transform_4, window_bounds = array<i64: 32, 1>}, {pipeline_mode = #tpu.pipeline_mode<synchronous>, transform_indices = @transform_5, window_bounds = array<i64: 32, 1>}, {pipeline_mode = #tpu.pipeline_mode<synchronous>, transform_indices = @transform_6, window_bounds = array<i64: 32, 32>}, {pipeline_mode = #tpu.pipeline_mode<synchronous>, transform_indices = @transform_7, window_bounds = array<i64: 32, 1>}, {pipeline_mode = #tpu.pipeline_mode<synchronous>, transform_indices = @transform_8, window_bounds = array<i64: 32, 1>}, {pipeline_mode = #tpu.pipeline_mode<synchronous>, transform_indices = @transform_9, window_bounds = array<i64: 1, 1>}, {transform_indices = @transform_10, window_bounds = array<i64: 1, 1024>}]} {
    %c0 = arith.constant 0 : index
    %c0_0 = arith.constant 0 : index
    %0 = vector.load %arg2[%c0, %c0_0] : memref<3x1024xf32, #tpu.memory_space<vmem>>, vector<1x1024xf32>
    %c1 = arith.constant 1 : index
    %c0_1 = arith.constant 0 : index
    %1 = vector.load %arg2[%c1, %c0_1] : memref<3x1024xf32, #tpu.memory_space<vmem>>, vector<1x1024xf32>
    %c2 = arith.constant 2 : index
    %c0_2 = arith.constant 0 : index
    %2 = vector.load %arg2[%c2, %c0_2] : memref<3x1024xf32, #tpu.memory_space<vmem>>, vector<1x1024xf32>
    %3 = arith.mulf %0, %0 : vector<1x1024xf32>
    %4 = arith.mulf %1, %1 : vector<1x1024xf32>
    %5 = arith.addf %3, %4 : vector<1x1024xf32>
    %6 = arith.mulf %2, %2 : vector<1x1024xf32>
    %7 = arith.addf %5, %6 : vector<1x1024xf32>
    %8 = math.sqrt %7 : vector<1x1024xf32>
    %cst = arith.constant 1.000000e-03 : f32
    %9 = vector.broadcast %cst : f32 to vector<1x1024xf32>
    %10 = arith.addf %8, %9 : vector<1x1024xf32>
    %cst_3 = arith.constant 0.000000e+00 : f32
    %11 = vector.broadcast %cst_3 : f32 to vector<1x1024xf32>
    %12 = arith.subf %11, %10 : vector<1x1024xf32>
    %13 = math.exp %12 : vector<1x1024xf32>
    %14 = arith.divf %13, %10 : vector<1x1024xf32>
    %15 = arith.mulf %13, %13 : vector<1x1024xf32>
    %c0_4 = arith.constant 0 : index
    %c0_5 = arith.constant 0 : index
    %16 = vector.load %arg3[%c0_4, %c0_5] : memref<32x1xf32, #tpu.memory_space<vmem>>, vector<32x1xf32>
    %17 = vector.broadcast %16 : vector<32x1xf32> to vector<32x1024xf32>
    %18 = vector.broadcast %13 : vector<1x1024xf32> to vector<32x1024xf32>
    %19 = arith.mulf %17, %18 : vector<32x1024xf32>
    %c0_6 = arith.constant 0 : index
    %c0_7 = arith.constant 0 : index
    %20 = vector.load %arg4[%c0_6, %c0_7] : memref<32x1xf32, #tpu.memory_space<vmem>>, vector<32x1xf32>
    %21 = vector.broadcast %20 : vector<32x1xf32> to vector<32x1024xf32>
    %22 = vector.broadcast %14 : vector<1x1024xf32> to vector<32x1024xf32>
    %23 = arith.mulf %21, %22 : vector<32x1024xf32>
    %24 = arith.addf %19, %23 : vector<32x1024xf32>
    %c0_8 = arith.constant 0 : index
    %c0_9 = arith.constant 0 : index
    %25 = vector.load %arg5[%c0_8, %c0_9] : memref<32x1xf32, #tpu.memory_space<vmem>>, vector<32x1xf32>
    %26 = vector.broadcast %25 : vector<32x1xf32> to vector<32x1024xf32>
    %27 = vector.broadcast %15 : vector<1x1024xf32> to vector<32x1024xf32>
    %28 = arith.mulf %26, %27 : vector<32x1024xf32>
    %29 = arith.addf %24, %28 : vector<32x1024xf32>
    %c0_10 = arith.constant 0 : index
    %c0_11 = arith.constant 0 : index
    %30 = vector.load %arg6[%c0_10, %c0_11] : memref<32x1xf32, #tpu.memory_space<vmem>>, vector<32x1xf32>
    %31 = vector.broadcast %30 : vector<32x1xf32> to vector<32x1024xf32>
    %32 = arith.addf %29, %31 : vector<32x1024xf32>
    %cst_12 = arith.constant 0.000000e+00 : f32
    %33 = vector.broadcast %cst_12 : f32 to vector<32x1024xf32>
    %34 = arith.minimumf %32, %33 : vector<32x1024xf32>
    %35 = math.exp %34 : vector<32x1024xf32>
    %cst_13 = arith.constant 1.000000e+00 : f32
    %36 = vector.broadcast %cst_13 : f32 to vector<32x1024xf32>
    %37 = arith.subf %35, %36 : vector<32x1024xf32>
    %38 = arith.maximumf %32, %37 : vector<32x1024xf32>
    %c0_14 = arith.constant 0 : index
    %c0_15 = arith.constant 0 : index
    %39 = vector.load %arg7[%c0_14, %c0_15] : memref<32x32xf32, #tpu.memory_space<vmem>>, vector<32x32xf32>
    %cst_16 = arith.constant dense<0.000000e+00> : vector<32x1024xf32>
    %40 = tpu.matmul %39, %38, %cst_16 {dimension_numbers = #tpu.dot_dimension_numbers<[1], [0], [0], [1], [0, 0, 1, 1], [], []>} : vector<32x32xf32>, vector<32x1024xf32>, vector<32x1024xf32> -> vector<32x1024xf32>
    %c0_17 = arith.constant 0 : index
    %c0_18 = arith.constant 0 : index
    %41 = vector.load %arg8[%c0_17, %c0_18] : memref<32x1xf32, #tpu.memory_space<vmem>>, vector<32x1xf32>
    %42 = vector.broadcast %41 : vector<32x1xf32> to vector<32x1024xf32>
    %43 = arith.addf %40, %42 : vector<32x1024xf32>
    %cst_19 = arith.constant 0.000000e+00 : f32
    %44 = vector.broadcast %cst_19 : f32 to vector<32x1024xf32>
    %45 = arith.minimumf %43, %44 : vector<32x1024xf32>
    %46 = math.exp %45 : vector<32x1024xf32>
    %cst_20 = arith.constant 1.000000e+00 : f32
    %47 = vector.broadcast %cst_20 : f32 to vector<32x1024xf32>
    %48 = arith.subf %46, %47 : vector<32x1024xf32>
    %49 = arith.maximumf %43, %48 : vector<32x1024xf32>
    %c0_21 = arith.constant 0 : index
    %c0_22 = arith.constant 0 : index
    %50 = vector.load %arg9[%c0_21, %c0_22] : memref<32x1xf32, #tpu.memory_space<vmem>>, vector<32x1xf32>
    %51 = vector.broadcast %50 : vector<32x1xf32> to vector<32x1024xf32>
    %52 = arith.mulf %51, %49 : vector<32x1024xf32>
    %cst_23 = arith.constant dense<0.000000e+00> : vector<1024xf32>
    %53 = vector.multi_reduction <add>, %52, %cst_23 [0] : vector<32x1024xf32> to vector<1024xf32>
    %54 = vector.shape_cast %53 : vector<1024xf32> to vector<1x1024xf32>
    %c0_24 = arith.constant 0 : index
    %c0_25 = arith.constant 0 : index
    %55 = vector.load %arg10[%c0_24, %c0_25] : memref<1x1xf32, #tpu.memory_space<vmem>>, vector<1x1xf32>
    %56 = vector.broadcast %55 : vector<1x1xf32> to vector<1x1024xf32>
    %57 = arith.addf %54, %56 : vector<1x1024xf32>
    %cst_26 = arith.constant 0.000000e+00 : f32
    %58 = vector.broadcast %cst_26 : f32 to vector<1x1024xf32>
    %59 = arith.minimumf %57, %58 : vector<1x1024xf32>
    %60 = math.exp %59 : vector<1x1024xf32>
    %cst_27 = arith.constant 1.000000e+00 : f32
    %61 = vector.broadcast %cst_27 : f32 to vector<1x1024xf32>
    %62 = arith.subf %60, %61 : vector<1x1024xf32>
    %63 = arith.maximumf %57, %62 : vector<1x1024xf32>
    %c0_28 = arith.constant 0 : index
    %c0_29 = arith.constant 0 : index
    %64 = memref.load %arg1[%c0_28, %c0_29] : memref<1x1xf32, #tpu.memory_space<smem>>
    %65 = vector.broadcast %64 : f32 to vector<1x1024xf32>
    %66 = arith.mulf %63, %65 : vector<1x1024xf32>
    %c0_30 = arith.constant 0 : index
    %c0_31 = arith.constant 0 : index
    %67 = vector.load %arg11[%c0_30, %c0_31] : memref<1x1024xf32, #tpu.memory_space<vmem>>, vector<1x1024xf32>
    tpu.vector_store %arg11[%c0_30, %c0_31], %66 {strides = array<i32>} : memref<1x1024xf32, #tpu.memory_space<vmem>>, vector<1x1024xf32>,
    return
  }
  func.func @transform_0(%arg0: i32) -> (i32, i32) {
    %c0_i32 = arith.constant 0 : i32
    %c0_i32_0 = arith.constant 0 : i32
    %c0_i32_1 = arith.constant 0 : i32
    return %c0_i32, %c0_i32_0 : i32, i32
  }
  func.func @transform_1(%arg0: i32) -> (i32, i32) {
    %c0_i32 = arith.constant 0 : i32
    %c0_i32_0 = arith.constant 0 : i32
    return %c0_i32, %arg0 : i32, i32
  }
  func.func @transform_2(%arg0: i32) -> (i32, i32) {
    %c0_i32 = arith.constant 0 : i32
    %c0_i32_0 = arith.constant 0 : i32
    %c0_i32_1 = arith.constant 0 : i32
    return %c0_i32, %c0_i32_0 : i32, i32
  }
  func.func @transform_3(%arg0: i32) -> (i32, i32) {
    %c0_i32 = arith.constant 0 : i32
    %c0_i32_0 = arith.constant 0 : i32
    %c0_i32_1 = arith.constant 0 : i32
    return %c0_i32, %c0_i32_0 : i32, i32
  }
  func.func @transform_4(%arg0: i32) -> (i32, i32) {
    %c0_i32 = arith.constant 0 : i32
    %c0_i32_0 = arith.constant 0 : i32
    %c0_i32_1 = arith.constant 0 : i32
    return %c0_i32, %c0_i32_0 : i32, i32
  }
  func.func @transform_5(%arg0: i32) -> (i32, i32) {
    %c0_i32 = arith.constant 0 : i32
    %c0_i32_0 = arith.constant 0 : i32
    %c0_i32_1 = arith.constant 0 : i32
    return %c0_i32, %c0_i32_0 : i32, i32
  }
  func.func @transform_6(%arg0: i32) -> (i32, i32) {
    %c0_i32 = arith.constant 0 : i32
    %c0_i32_0 = arith.constant 0 : i32
    %c0_i32_1 = arith.constant 0 : i32
    return %c0_i32, %c0_i32_0 : i32, i32
  }
  func.func @transform_7(%arg0: i32) -> (i32, i32) {
    %c0_i32 = arith.constant 0 : i32
    %c0_i32_0 = arith.constant 0 : i32
    %c0_i32_1 = arith.constant 0 : i32
    return %c0_i32, %c0_i32_0 : i32, i32
  }
  func.func @transform_8(%arg0: i32) -> (i32, i32) {
    %c0_i32 = arith.constant 0 : i32
    %c0_i32_0 = arith.constant 0 : i32
    %c0_i32_1 = arith.constant 0 : i32
    return %c0_i32, %c0_i32_0 : i32, i32
  }
  func.func @transform_9(%arg0: i32) -> (i32, i32) {
    %c0_i32 = arith.constant 0 : i32
    %c0_i32_0 = arith.constant 0 : i32
    %c0_i32_1 = arith.constant 0 : i32
    return %c0_i32, %c0_i32_0 : i32, i32
  }
  func.func @transform_10(%arg0: i32) -> (i32, i32) {
    %c0_i32 = arith.constant 0 : i32
    %c0_i32_0 = arith.constant 0 : i32
    return %c0_i32, %arg0 : i32, i32
  }
}

</mosaic_0001>

<llo_original>
// kernel: ml_density_functional.1
$region0: #{ml_density_functional.1}
  #allocation0 [shape = 'u32[]', space=smem, size = 0x4, offset = 0x4, fixed_abs, tag = 'smem constant byte address 0x4 - core index']
  #allocation1 [shape = 'u32[144,128]{1,0:T(1,128)}', space=vmem, size = 0x12000, scoped, tag = 'internal scratch']
  #allocation2 [shape = 'f32[1,1]{1,0:T(1,128)S(6)}', space=smem, size = 0x200, scoped, tag = 'scoped memory for ml_density_functional.1']
  #allocation3 [shape = 'f32[1,1]{1,0:T(1,128)S(1)}', space=vmem, size = 0x200, scoped, tag = 'scoped memory for ml_density_functional.1']
  %s0 = inlined_call_operand.<no memory space> [shape: f32[1,1], index: 0, kind: input, shape index: {}]
  %s1 = inlined_call_operand.vmem [shape: f32[3,1024], index: 1, kind: input, shape index: {}]
  %s2 = inlined_call_operand.vmem [shape: f32[32,1], index: 2, kind: input, shape index: {}]
  %s3 = inlined_call_operand.vmem [shape: f32[32,1], index: 3, kind: input, shape index: {}]
  %s4 = inlined_call_operand.vmem [shape: f32[32,1], index: 4, kind: input, shape index: {}]
  %s5 = inlined_call_operand.vmem [shape: f32[32,1], index: 5, kind: input, shape index: {}]
  %s6 = inlined_call_operand.vmem [shape: f32[32,32], index: 6, kind: input, shape index: {}]
  %s7 = inlined_call_operand.vmem [shape: f32[32,1], index: 7, kind: input, shape index: {}]
  %s8 = inlined_call_operand.vmem [shape: f32[32,1], index: 8, kind: input, shape index: {}]
  %s9 = inlined_call_operand.<no memory space> [shape: f32[1,1], index: 9, kind: input, shape index: {}]
  %s10 = inlined_call_operand.hbm [shape: f32[1,1024], index: 10, kind: output, shape index: {}]
  %s11 = sld [smem:[#allocation0]]
  $region50: #{ml_density_functional.1} parent=0
    _
  %s13 = ssub.s32 1, %s11
  %s14 = scalar_select 0, %s13, %s11
  %15 = sst [smem:[#allocation2]] %s0
  %v16 = vstv %s9
  %17 = vst [vmem:[#allocation3] sm:$0x1] %v16
  $region1: #{ml_density_functional.1} parent=0
    #allocation4 [shape = 'u8[4096]{0}', space=vmem, size = 0x1000, scoped, tag = 'output window, operand 0, single buffered']
    #allocation5 [shape = 's32[1]{0}', space=sflag, size = 0x4, scoped, tag = 'scoped memory for ml_density_functional.1']
    %18 = vsyncpa [#allocation5], 0
    // Predicated region
    $region2: #{ml_density_functional.1} parent=1 // pred_check
      _
    $region3: #{ml_density_functional.1} parent=1 // pred_check_branch
      %20 = sbr.rel (0) target = $region5
    $region4: #{ml_density_functional.1} parent=1 // pred_region
      _
    $region5: #{ml_density_functional.1} parent=1 // pred_fallthru
      _
    // Predicated region
    $region6: #{ml_density_functional.1} parent=1 // pred_check
      _
    $region7: #{ml_density_functional.1} parent=1 // pred_check_branch
      %22 = sbr.rel (0) target = $region9
    $region8: #{ml_density_functional.1} parent=1 // pred_region
      _
    $region9: #{ml_density_functional.1} parent=1 // pred_fallthru
      _
    // Predicated region
    $region10: #{ml_density_functional.1} parent=1 // pred_check
      _
    $region11: #{ml_density_functional.1} parent=1 // pred_check_branch
      %24 = sbr.rel (0) target = $region13
    $region12: #{ml_density_functional.1} parent=1 // pred_region
      _
    $region13: #{ml_density_functional.1} parent=1 // pred_fallthru
      _
    // Predicated region
    $region14: #{ml_density_functional.1} parent=1 // pred_check
      _
    $region15: #{ml_density_functional.1} parent=1 // pred_check_branch
      %26 = sbr.rel (0) target = $region17
    $region16: #{ml_density_functional.1} parent=1 // pred_region
      _
    $region17: #{ml_density_functional.1} parent=1 // pred_fallthru
      _
    // Predicated region
    $region18: #{ml_density_functional.1} parent=1 // pred_check
      _
    $region19: #{ml_density_functional.1} parent=1 // pred_check_branch
      %28 = sbr.rel (0) target = $region21
    $region20: #{ml_density_functional.1} parent=1 // pred_region
      _
    $region21: #{ml_density_functional.1} parent=1 // pred_fallthru
      _
    // Predicated region
    $region22: #{ml_density_functional.1} parent=1 // pred_check
      _
    $region23: #{ml_density_functional.1} parent=1 // pred_check_branch
      %30 = sbr.rel (0) target = $region25
    $region24: #{ml_density_functional.1} parent=1 // pred_region
      _
    $region25: #{ml_density_functional.1} parent=1 // pred_fallthru
      _
    // Predicated region
    $region26: #{ml_density_functional.1} parent=1 // pred_check
      _
    $region27: #{ml_density_functional.1} parent=1 // pred_check_branch
      %32 = sbr.rel (0) target = $region29
    $region28: #{ml_density_functional.1} parent=1 // pred_region
      _
    $region29: #{ml_density_functional.1} parent=1 // pred_fallthru
      _
    // Predicated region
    $region30: #{ml_density_functional.1} parent=1 // pred_check
      _
    $region31: #{ml_density_functional.1} parent=1 // pred_check_branch
      %34 = sbr.rel (0) target = $region33
    $region32: #{ml_density_functional.1} parent=1 // pred_region
      _
    $region33: #{ml_density_functional.1} parent=1 // pred_fallthru
      _
    // Predicated region
    $region34: #{ml_density_functional.1} parent=1 // pred_check
      _
    $region35: #{ml_density_functional.1} parent=1 // pred_check_branch
      %36 = sbr.rel (0) target = $region37
    $region36: #{ml_density_functional.1} parent=1 // pred_region
      _
    $region37: #{ml_density_functional.1} parent=1 // pred_fallthru
      _
    // Predicated region
    $region38: #{ml_density_functional.1} parent=1 // pred_check
      _
    $region39: #{ml_density_functional.1} parent=1 // pred_check_branch
      %38 = sbr.rel (0) target = $region41
    $region40: #{ml_density_functional.1} parent=1 // pred_region
      _
    $region41: #{ml_density_functional.1} parent=1 // pred_fallthru
      _
    %v39 = vld [vmem:[%s1] ss:$4 sm:$0xff]
    %s40 = scalar_lea.vmem %s1, 1
    %v41 = vld [vmem:[%s40] ss:$4 sm:$0xff]
    %s42 = scalar_lea.vmem %s1, 2
    %v43 = vld [vmem:[%s42] ss:$4 sm:$0xff]
    %v44 = vmul.f32 %v39, %v39
    %v45 = vmul.f32 %v41, %v41
    %v46 = vadd.f32 %v44, %v45
    %v47 = vmul.f32 %v43, %v43
    %v48 = vadd.f32 %v46, %v47
    %v49 = vrsqrt.pop %v48
    %v50 = vmul.f32 %v48, %v49
    %vm51 = vcmp.eq.f32.partialorder %v48, inf
    %v52 = vsel %vm51, %v48, %v50
    %vm53 = vcmp.eq.f32.partialorder %v48, 0.0
    %v54 = vand.u32 %v48, 2147483648
    %v55 = vsel %vm53, %v54, %v52
    %v56 = vadd.f32 %v55, 0.001
    %v57 = vsub.f32 0.0, %v56
    %v58 = vmul.f32 %v57, 1.442695
    %v59 = vpow.pop %v58
    %v60 = vrcp.pop %v56
    %v61 = vmul.f32 %v59, %v60
    %v62 = vmul.f32 %v59, %v59
    %v63 = vld [vmem:[%s2] sm:$0xff]
    %v64 = vld [vmem:[%s2 + $0x8] sm:$0xff]
    %v65 = vld [vmem:[%s2 + $0x10] sm:$0xff]
    %v66 = vld [vmem:[%s2 + $0x18] sm:$0xff]
    %68 = vset.pattern.permute.xlu0 0
    %69 = vperm.xlu0 %68, %v63
    %v70 = vpop.permute.xlu0 %69
    %73 = vset.pattern.permute.xlu0 0
    %74 = vperm.xlu0 %73, %v64
    %v75 = vpop.permute.xlu0 %74
    %78 = vset.pattern.permute.xlu0 0
    %79 = vperm.xlu0 %78, %v65
    %v80 = vpop.permute.xlu0 %79
    %83 = vset.pattern.permute.xlu0 0
    %84 = vperm.xlu0 %83, %v66
    %v85 = vpop.permute.xlu0 %84
    %v88 = vlaneseq
    %v89 = vshrl.u32 %v88, 7
    %v90 = vsub.s32 0, %v89
    %v91 = vrot.slane %v59, %v90
    %v92 = vlaneseq
    %v93 = vshrl.u32 %v92, 7
    %v94 = vsub.s32 1, %v93
    %v95 = vrot.slane %v59, %v94
    %v96 = vlaneseq
    %v97 = vshrl.u32 %v96, 7
    %v98 = vsub.s32 2, %v97
    %v99 = vrot.slane %v59, %v98
    %v100 = vlaneseq
    %v101 = vshrl.u32 %v100, 7
    %v102 = vsub.s32 3, %v101
    %v103 = vrot.slane %v59, %v102
    %v104 = vlaneseq
    %v105 = vshrl.u32 %v104, 7
    %v106 = vsub.s32 4, %v105
    %v107 = vrot.slane %v59, %v106
    %v108 = vlaneseq
    %v109 = vshrl.u32 %v108, 7
    %v110 = vsub.s32 5, %v109
    %v111 = vrot.slane %v59, %v110
    %v112 = vlaneseq
    %v113 = vshrl.u32 %v112, 7
    %v114 = vsub.s32 6, %v113
    %v115 = vrot.slane %v59, %v114
    %v116 = vlaneseq
    %v117 = vshrl.u32 %v116, 7
    %v118 = vsub.s32 7, %v117
    %v119 = vrot.slane %v59, %v118
    %v128 = vmul.f32 %v70, %v91
    %v129 = vmul.f32 %v70, %v95
    %v130 = vmul.f32 %v70, %v99
    %v131 = vmul.f32 %v70, %v103
    %v132 = vmul.f32 %v70, %v107
    %v133 = vmul.f32 %v70, %v111
    %v134 = vmul.f32 %v70, %v115
    %v135 = vmul.f32 %v70, %v119
    %v136 = vmul.f32 %v75, %v91
    %v137 = vmul.f32 %v75, %v95
    %v138 = vmul.f32 %v75, %v99
    %v139 = vmul.f32 %v75, %v103
    %v140 = vmul.f32 %v75, %v107
    %v141 = vmul.f32 %v75, %v111
    %v142 = vmul.f32 %v75, %v115
    %v143 = vmul.f32 %v75, %v119
    %v144 = vmul.f32 %v80, %v91
    %v145 = vmul.f32 %v80, %v95
    %v146 = vmul.f32 %v80, %v99
    %v147 = vmul.f32 %v80, %v103
    %v148 = vmul.f32 %v80, %v107
    %v149 = vmul.f32 %v80, %v111
    %v150 = vmul.f32 %v80, %v115
    %v151 = vmul.f32 %v80, %v119
    %v152 = vmul.f32 %v85, %v91
    %v153 = vmul.f32 %v85, %v95
    %v154 = vmul.f32 %v85, %v99
    %v155 = vmul.f32 %v85, %v103
    %v156 = vmul.f32 %v85, %v107
    %v157 = vmul.f32 %v85, %v111
    %v158 = vmul.f32 %v85, %v115
    %v159 = vmul.f32 %v85, %v119
    %v160 = vld [vmem:[%s3] sm:$0xff]
    %v161 = vld [vmem:[%s3 + $0x8] sm:$0xff]
    %v162 = vld [vmem:[%s3 + $0x10] sm:$0xff]
    %v163 = vld [vmem:[%s3 + $0x18] sm:$0xff]
    %165 = vset.pattern.permute.xlu0 0
    %166 = vperm.xlu0 %165, %v160
    %v167 = vpop.permute.xlu0 %166
    %170 = vset.pattern.permute.xlu0 0
    %171 = vperm.xlu0 %170, %v161
    %v172 = vpop.permute.xlu0 %171
    %175 = vset.pattern.permute.xlu0 0
    %176 = vperm.xlu0 %175, %v162
    %v177 = vpop.permute.xlu0 %176
    %180 = vset.pattern.permute.xlu0 0
    %181 = vperm.xlu0 %180, %v163
    %v182 = vpop.permute.xlu0 %181
    %v185 = vlaneseq
    %v186 = vshrl.u32 %v185, 7
    %v187 = vsub.s32 0, %v186
    %v188 = vrot.slane %v61, %v187
    %v189 = vlaneseq
    %v190 = vshrl.u32 %v189, 7
    %v191 = vsub.s32 1, %v190
    %v192 = vrot.slane %v61, %v191
    %v193 = vlaneseq
    %v194 = vshrl.u32 %v193, 7
    %v195 = vsub.s32 2, %v194
    %v196 = vrot.slane %v61, %v195
    %v197 = vlaneseq
    %v198 = vshrl.u32 %v197, 7
    %v199 = vsub.s32 3, %v198
    %v200 = vrot.slane %v61, %v199
    %v201 = vlaneseq
    %v202 = vshrl.u32 %v201, 7
    %v203 = vsub.s32 4, %v202
    %v204 = vrot.slane %v61, %v203
    %v205 = vlaneseq
    %v206 = vshrl.u32 %v205, 7
    %v207 = vsub.s32 5, %v206
    %v208 = vrot.slane %v61, %v207
    %v209 = vlaneseq
    %v210 = vshrl.u32 %v209, 7
    %v211 = vsub.s32 6, %v210
    %v212 = vrot.slane %v61, %v211
    %v213 = vlaneseq
    %v214 = vshrl.u32 %v213, 7
    %v215 = vsub.s32 7, %v214
    %v216 = vrot.slane %v61, %v215
    %v225 = vmul.f32 %v167, %v188
    %v226 = vmul.f32 %v167, %v192
    %v227 = vmul.f32 %v167, %v196
    %v228 = vmul.f32 %v167, %v200
    %v229 = vmul.f32 %v167, %v204
    %v230 = vmul.f32 %v167, %v208
    %v231 = vmul.f32 %v167, %v212
    %v232 = vmul.f32 %v167, %v216
    %v233 = vmul.f32 %v172, %v188
    %v234 = vmul.f32 %v172, %v192
    %v235 = vmul.f32 %v172, %v196
    %v236 = vmul.f32 %v172, %v200
    %v237 = vmul.f32 %v172, %v204
    %v238 = vmul.f32 %v172, %v208
    %v239 = vmul.f32 %v172, %v212
    %v240 = vmul.f32 %v172, %v216
    %v241 = vmul.f32 %v177, %v188
    %v242 = vmul.f32 %v177, %v192
    %v243 = vmul.f32 %v177, %v196
    %v244 = vmul.f32 %v177, %v200
    %v245 = vmul.f32 %v177, %v204
    %v246 = vmul.f32 %v177, %v208
    %v247 = vmul.f32 %v177, %v212
    %v248 = vmul.f32 %v177, %v216
    %v249 = vmul.f32 %v182, %v188
    %v250 = vmul.f32 %v182, %v192
    %v251 = vmul.f32 %v182, %v196
    %v252 = vmul.f32 %v182, %v200
    %v253 = vmul.f32 %v182, %v204
    %v254 = vmul.f32 %v182, %v208
    %v255 = vmul.f32 %v182, %v212
    %v256 = vmul.f32 %v182, %v216
    %v257 = vadd.f32 %v128, %v225
    %v258 = vadd.f32 %v129, %v226
    %v259 = vadd.f32 %v130, %v227
    %v260 = vadd.f32 %v131, %v228
    %v261 = vadd.f32 %v132, %v229
    %v262 = vadd.f32 %v133, %v230
    %v263 = vadd.f32 %v134, %v231
    %v264 = vadd.f32 %v135, %v232
    %v265 = vadd.f32 %v136, %v233
    %v266 = vadd.f32 %v137, %v234
    %v267 = vadd.f32 %v138, %v235
    %v268 = vadd.f32 %v139, %v236
    %v269 = vadd.f32 %v140, %v237
    %v270 = vadd.f32 %v141, %v238
    %v271 = vadd.f32 %v142, %v239
    %v272 = vadd.f32 %v143, %v240
    %v273 = vadd.f32 %v144, %v241
    %v274 = vadd.f32 %v145, %v242
    %v275 = vadd.f32 %v146, %v243
    %v276 = vadd.f32 %v147, %v244
    %v277 = vadd.f32 %v148, %v245
    %v278 = vadd.f32 %v149, %v246
    %v279 = vadd.f32 %v150, %v247
    %v280 = vadd.f32 %v151, %v248
    %v281 = vadd.f32 %v152, %v249
    %v282 = vadd.f32 %v153, %v250
    %v283 = vadd.f32 %v154, %v251
    %v284 = vadd.f32 %v155, %v252
    %v285 = vadd.f32 %v156, %v253
    %v286 = vadd.f32 %v157, %v254
    %v287 = vadd.f32 %v158, %v255
    %v288 = vadd.f32 %v159, %v256
    %v289 = vld [vmem:[%s4] sm:$0xff]
    %v290 = vld [vmem:[%s4 + $0x8] sm:$0xff]
    %v291 = vld [vmem:[%s4 + $0x10] sm:$0xff]
    %v292 = vld [vmem:[%s4 + $0x18] sm:$0xff]
    %294 = vset.pattern.permute.xlu0 0
    %295 = vperm.xlu0 %294, %v289
    %v296 = vpop.permute.xlu0 %295
    %299 = vset.pattern.permute.xlu0 0
    %300 = vperm.xlu0 %299, %v290
    %v301 = vpop.permute.xlu0 %300
    %304 = vset.pattern.permute.xlu0 0
    %305 = vperm.xlu0 %304, %v291
    %v306 = vpop.permute.xlu0 %305
    %309 = vset.pattern.permute.xlu0 0
    %310 = vperm.xlu0 %309, %v292
    %v311 = vpop.permute.xlu0 %310
    %v314 = vlaneseq
    %v315 = vshrl.u32 %v314, 7
    %v316 = vsub.s32 0, %v315
    %v317 = vrot.slane %v62, %v316
    %v318 = vlaneseq
    %v319 = vshrl.u32 %v318, 7
    %v320 = vsub.s32 1, %v319
    %v321 = vrot.slane %v62, %v320
    %v322 = vlaneseq
    %v323 = vshrl.u32 %v322, 7
    %v324 = vsub.s32 2, %v323
    %v325 = vrot.slane %v62, %v324
    %v326 = vlaneseq
    %v327 = vshrl.u32 %v326, 7
    %v328 = vsub.s32 3, %v327
    %v329 = vrot.slane %v62, %v328
    %v330 = vlaneseq
    %v331 = vshrl.u32 %v330, 7
    %v332 = vsub.s32 4, %v331
    %v333 = vrot.slane %v62, %v332
    %v334 = vlaneseq
    %v335 = vshrl.u32 %v334, 7
    %v336 = vsub.s32 5, %v335
    %v337 = vrot.slane %v62, %v336
    %v338 = vlaneseq
    %v339 = vshrl.u32 %v338, 7
    %v340 = vsub.s32 6, %v339
    %v341 = vrot.slane %v62, %v340
    %v342 = vlaneseq
    %v343 = vshrl.u32 %v342, 7
    %v344 = vsub.s32 7, %v343
    %v345 = vrot.slane %v62, %v344
    %v354 = vmul.f32 %v296, %v317
    %v355 = vmul.f32 %v296, %v321
    %v356 = vmul.f32 %v296, %v325
    %v357 = vmul.f32 %v296, %v329
    %v358 = vmul.f32 %v296, %v333
    %v359 = vmul.f32 %v296, %v337
    %v360 = vmul.f32 %v296, %v341
    %v361 = vmul.f32 %v296, %v345
    %v362 = vmul.f32 %v301, %v317
    %v363 = vmul.f32 %v301, %v321
    %v364 = vmul.f32 %v301, %v325
    %v365 = vmul.f32 %v301, %v329
    %v366 = vmul.f32 %v301, %v333
    %v367 = vmul.f32 %v301, %v337
    %v368 = vmul.f32 %v301, %v341
    %v369 = vmul.f32 %v301, %v345
    %v370 = vmul.f32 %v306, %v317
    %v371 = vmul.f32 %v306, %v321
    %v372 = vmul.f32 %v306, %v325
    %v373 = vmul.f32 %v306, %v329
    %v374 = vmul.f32 %v306, %v333
    %v375 = vmul.f32 %v306, %v337
    %v376 = vmul.f32 %v306, %v341
    %v377 = vmul.f32 %v306, %v345
    %v378 = vmul.f32 %v311, %v317
    %v379 = vmul.f32 %v311, %v321
    %v380 = vmul.f32 %v311, %v325
    %v381 = vmul.f32 %v311, %v329
    %v382 = vmul.f32 %v311, %v333
    %v383 = vmul.f32 %v311, %v337
    %v384 = vmul.f32 %v311, %v341
    %v385 = vmul.f32 %v311, %v345
    %v386 = vadd.f32 %v257, %v354
    %v387 = vadd.f32 %v258, %v355
    %v388 = vadd.f32 %v259, %v356
    %v389 = vadd.f32 %v260, %v357
    %v390 = vadd.f32 %v261, %v358
    %v391 = vadd.f32 %v262, %v359
    %v392 = vadd.f32 %v263, %v360
    %v393 = vadd.f32 %v264, %v361
    %v394 = vadd.f32 %v265, %v362
    %v395 = vadd.f32 %v266, %v363
    %v396 = vadd.f32 %v267, %v364
    %v397 = vadd.f32 %v268, %v365
    %v398 = vadd.f32 %v269, %v366
    %v399 = vadd.f32 %v270, %v367
    %v400 = vadd.f32 %v271, %v368
    %v401 = vadd.f32 %v272, %v369
    %v402 = vadd.f32 %v273, %v370
    %v403 = vadd.f32 %v274, %v371
    %v404 = vadd.f32 %v275, %v372
    %v405 = vadd.f32 %v276, %v373
    %v406 = vadd.f32 %v277, %v374
    %v407 = vadd.f32 %v278, %v375
    %v408 = vadd.f32 %v279, %v376
    %v409 = vadd.f32 %v280, %v377
    %v410 = vadd.f32 %v281, %v378
    %v411 = vadd.f32 %v282, %v379
    %v412 = vadd.f32 %v283, %v380
    %v413 = vadd.f32 %v284, %v381
    %v414 = vadd.f32 %v285, %v382
    %v415 = vadd.f32 %v286, %v383
    %v416 = vadd.f32 %v287, %v384
    %v417 = vadd.f32 %v288, %v385
    %v418 = vld [vmem:[%s5] sm:$0xff]
    %v419 = vld [vmem:[%s5 + $0x8] sm:$0xff]
    %v420 = vld [vmem:[%s5 + $0x10] sm:$0xff]
    %v421 = vld [vmem:[%s5 + $0x18] sm:$0xff]
    %423 = vset.pattern.permute.xlu0 0
    %424 = vperm.xlu0 %423, %v418
    %v425 = vpop.permute.xlu0 %424
    %428 = vset.pattern.permute.xlu0 0
    %429 = vperm.xlu0 %428, %v419
    %v430 = vpop.permute.xlu0 %429
    %433 = vset.pattern.permute.xlu0 0
    %434 = vperm.xlu0 %433, %v420
    %v435 = vpop.permute.xlu0 %434
    %438 = vset.pattern.permute.xlu0 0
    %439 = vperm.xlu0 %438, %v421
    %v440 = vpop.permute.xlu0 %439
    %v442 = vadd.f32 %v386, %v425
    %v443 = vadd.f32 %v387, %v425
    %v444 = vadd.f32 %v388, %v425
    %v445 = vadd.f32 %v389, %v425
    %v446 = vadd.f32 %v390, %v425
    %v447 = vadd.f32 %v391, %v425
    %v448 = vadd.f32 %v392, %v425
    %v449 = vadd.f32 %v393, %v425
    %v450 = vadd.f32 %v394, %v430
    %v451 = vadd.f32 %v395, %v430
    %v452 = vadd.f32 %v396, %v430
    %v453 = vadd.f32 %v397, %v430
    %v454 = vadd.f32 %v398, %v430
    %v455 = vadd.f32 %v399, %v430
    %v456 = vadd.f32 %v400, %v430
    %v457 = vadd.f32 %v401, %v430
    %v458 = vadd.f32 %v402, %v435
    %v459 = vadd.f32 %v403, %v435
    %v460 = vadd.f32 %v404, %v435
    %v461 = vadd.f32 %v405, %v435
    %v462 = vadd.f32 %v406, %v435
    %v463 = vadd.f32 %v407, %v435
    %v464 = vadd.f32 %v408, %v435
    %v465 = vadd.f32 %v409, %v435
    %v466 = vadd.f32 %v410, %v440
    %v467 = vadd.f32 %v411, %v440
    %v468 = vadd.f32 %v412, %v440
    %v469 = vadd.f32 %v413, %v440
    %v470 = vadd.f32 %v414, %v440
    %v471 = vadd.f32 %v415, %v440
    %v472 = vadd.f32 %v416, %v440
    %v473 = vadd.f32 %v417, %v440
    %v474 = vmin.f32 %v442, 0.0
    %v475 = vmin.f32 %v443, 0.0
    %v476 = vmin.f32 %v444, 0.0
    %v477 = vmin.f32 %v445, 0.0
    %v478 = vmin.f32 %v446, 0.0
    %v479 = vmin.f32 %v447, 0.0
    %v480 = vmin.f32 %v448, 0.0
    %v481 = vmin.f32 %v449, 0.0
    %v482 = vmin.f32 %v450, 0.0
    %v483 = vmin.f32 %v451, 0.0
    %v484 = vmin.f32 %v452, 0.0
    %v485 = vmin.f32 %v453, 0.0
    %v486 = vmin.f32 %v454, 0.0
    %v487 = vmin.f32 %v455, 0.0
    %v488 = vmin.f32 %v456, 0.0
    %v489 = vmin.f32 %v457, 0.0
    %v490 = vmin.f32 %v458, 0.0
    %v491 = vmin.f32 %v459, 0.0
    %v492 = vmin.f32 %v460, 0.0
    %v493 = vmin.f32 %v461, 0.0
    %v494 = vmin.f32 %v462, 0.0
    %v495 = vmin.f32 %v463, 0.0
    %v496 = vmin.f32 %v464, 0.0
    %v497 = vmin.f32 %v465, 0.0
    %v498 = vmin.f32 %v466, 0.0
    %v499 = vmin.f32 %v467, 0.0
    %v500 = vmin.f32 %v468, 0.0
    %v501 = vmin.f32 %v469, 0.0
    %v502 = vmin.f32 %v470, 0.0
    %v503 = vmin.f32 %v471, 0.0
    %v504 = vmin.f32 %v472, 0.0
    %v505 = vmin.f32 %v473, 0.0
    %v506 = vmul.f32 %v474, 1.442695
    %v507 = vpow.pop %v506
    %v508 = vmul.f32 %v475, 1.442695
    %v509 = vpow.pop %v508
    %v510 = vmul.f32 %v476, 1.442695
    %v511 = vpow.pop %v510
    %v512 = vmul.f32 %v477, 1.442695
    %v513 = vpow.pop %v512
    %v514 = vmul.f32 %v478, 1.442695
    %v515 = vpow.pop %v514
    %v516 = vmul.f32 %v479, 1.442695
    %v517 = vpow.pop %v516
    %v518 = vmul.f32 %v480, 1.442695
    %v519 = vpow.pop %v518
    %v520 = vmul.f32 %v481, 1.442695
    %v521 = vpow.pop %v520
    %v522 = vmul.f32 %v482, 1.442695
    %v523 = vpow.pop %v522
    %v524 = vmul.f32 %v483, 1.442695
    %v525 = vpow.pop %v524
    %v526 = vmul.f32 %v484, 1.442695
    %v527 = vpow.pop %v526
    %v528 = vmul.f32 %v485, 1.442695
    %v529 = vpow.pop %v528
    %v530 = vmul.f32 %v486, 1.442695
    %v531 = vpow.pop %v530
    %v532 = vmul.f32 %v487, 1.442695
    %v533 = vpow.pop %v532
    %v534 = vmul.f32 %v488, 1.442695
    %v535 = vpow.pop %v534
    %v536 = vmul.f32 %v489, 1.442695
    %v537 = vpow.pop %v536
    %v538 = vmul.f32 %v490, 1.442695
    %v539 = vpow.pop %v538
    %v540 = vmul.f32 %v491, 1.442695
    %v541 = vpow.pop %v540
    %v542 = vmul.f32 %v492, 1.442695
    %v543 = vpow.pop %v542
    %v544 = vmul.f32 %v493, 1.442695
    %v545 = vpow.pop %v544
    %v546 = vmul.f32 %v494, 1.442695
    %v547 = vpow.pop %v546
    %v548 = vmul.f32 %v495, 1.442695
    %v549 = vpow.pop %v548
    %v550 = vmul.f32 %v496, 1.442695
    %v551 = vpow.pop %v550
    %v552 = vmul.f32 %v497, 1.442695
    %v553 = vpow.pop %v552
    %v554 = vmul.f32 %v498, 1.442695
    %v555 = vpow.pop %v554
    %v556 = vmul.f32 %v499, 1.442695
    %v557 = vpow.pop %v556
    %v558 = vmul.f32 %v500, 1.442695
    %v559 = vpow.pop %v558
    %v560 = vmul.f32 %v501, 1.442695
    %v561 = vpow.pop %v560
    %v562 = vmul.f32 %v502, 1.442695
    %v563 = vpow.pop %v562
    %v564 = vmul.f32 %v503, 1.442695
    %v565 = vpow.pop %v564
    %v566 = vmul.f32 %v504, 1.442695
    %v567 = vpow.pop %v566
    %v568 = vmul.f32 %v505, 1.442695
    %v569 = vpow.pop %v568
    %v570 = vsub.f32 %v507, 1.0
    %v571 = vsub.f32 %v509, 1.0
    %v572 = vsub.f32 %v511, 1.0
    %v573 = vsub.f32 %v513, 1.0
    %v574 = vsub.f32 %v515, 1.0
    %v575 = vsub.f32 %v517, 1.0
    %v576 = vsub.f32 %v519, 1.0
    %v577 = vsub.f32 %v521, 1.0
    %v578 = vsub.f32 %v523, 1.0
    %v579 = vsub.f32 %v525, 1.0
    %v580 = vsub.f32 %v527, 1.0
    %v581 = vsub.f32 %v529, 1.0
    %v582 = vsub.f32 %v531, 1.0
    %v583 = vsub.f32 %v533, 1.0
    %v584 = vsub.f32 %v535, 1.0
    %v585 = vsub.f32 %v537, 1.0
    %v586 = vsub.f32 %v539, 1.0
    %v587 = vsub.f32 %v541, 1.0
    %v588 = vsub.f32 %v543, 1.0
    %v589 = vsub.f32 %v545, 1.0
    %v590 = vsub.f32 %v547, 1.0
    %v591 = vsub.f32 %v549, 1.0
    %v592 = vsub.f32 %v551, 1.0
    %v593 = vsub.f32 %v553, 1.0
    %v594 = vsub.f32 %v555, 1.0
    %v595 = vsub.f32 %v557, 1.0
    %v596 = vsub.f32 %v559, 1.0
    %v597 = vsub.f32 %v561, 1.0
    %v598 = vsub.f32 %v563, 1.0
    %v599 = vsub.f32 %v565, 1.0
    %v600 = vsub.f32 %v567, 1.0
    %v601 = vsub.f32 %v569, 1.0
    %v602 = vmax.f32 %v442, %v570
    %v603 = vmax.f32 %v443, %v571
    %v604 = vmax.f32 %v444, %v572
    %v605 = vmax.f32 %v445, %v573
    %v606 = vmax.f32 %v446, %v574
    %v607 = vmax.f32 %v447, %v575
    %v608 = vmax.f32 %v448, %v576
    %v609 = vmax.f32 %v449, %v577
    %v610 = vmax.f32 %v450, %v578
    %v611 = vmax.f32 %v451, %v579
    %v612 = vmax.f32 %v452, %v580
    %v613 = vmax.f32 %v453, %v581
    %v614 = vmax.f32 %v454, %v582
    %v615 = vmax.f32 %v455, %v583
    %v616 = vmax.f32 %v456, %v584
    %v617 = vmax.f32 %v457, %v585
    %v618 = vmax.f32 %v458, %v586
    %v619 = vmax.f32 %v459, %v587
    %v620 = vmax.f32 %v460, %v588
    %v621 = vmax.f32 %v461, %v589
    %v622 = vmax.f32 %v462, %v590
    %v623 = vmax.f32 %v463, %v591
    %v624 = vmax.f32 %v464, %v592
    %v625 = vmax.f32 %v465, %v593
    %v626 = vmax.f32 %v466, %v594
    %v627 = vmax.f32 %v467, %v595
    %v628 = vmax.f32 %v468, %v596
    %v629 = vmax.f32 %v469, %v597
    %v630 = vmax.f32 %v470, %v598
    %v631 = vmax.f32 %v471, %v599
    %v632 = vmax.f32 %v472, %v600
    %v633 = vmax.f32 %v473, %v601
    %v634 = vld [vmem:[%s6] sm:$0xff]
    %v635 = vld [vmem:[%s6 + $0x8] sm:$0xff]
    %v636 = vld [vmem:[%s6 + $0x10] sm:$0xff]
    %v637 = vld [vmem:[%s6 + $0x18] sm:$0xff]
    %v638 = vld [vmem:[%s7] sm:$0xff]
    %v639 = vld [vmem:[%s7 + $0x8] sm:$0xff]
    %v640 = vld [vmem:[%s7 + $0x10] sm:$0xff]
    %v641 = vld [vmem:[%s7 + $0x18] sm:$0xff]
    %643 = vset.pattern.permute.xlu0 0
    %644 = vperm.xlu0 %643, %v638
    %v645 = vpop.permute.xlu0 %644
    %648 = vset.pattern.permute.xlu0 0
    %649 = vperm.xlu0 %648, %v639
    %v650 = vpop.permute.xlu0 %649
    %653 = vset.pattern.permute.xlu0 0
    %654 = vperm.xlu0 %653, %v640
    %v655 = vpop.permute.xlu0 %654
    %658 = vset.pattern.permute.xlu0 0
    %659 = vperm.xlu0 %658, %v641
    %v660 = vpop.permute.xlu0 %659
    %vm662 = vcmask 261120
    %v664 = vsel %vm662, %v634, 0
    %v667 = vsel %vm662, %v635, 0
    %v670 = vsel %vm662, %v636, 0
    %v673 = vsel %vm662, %v637, 0
    %675 = vmatprep.subr.mxu0 %v603
    %676 = vmatpush1.msra.mxu0 %v602
    %677 = vmatprep.subr.mxu0 %v611
    %678 = vmatpush1.msra.mxu0 %v610
    %679 = vmatprep.subr.mxu0 %v619
    %680 = vmatpush1.msra.mxu0 %v618
    %681 = vmatprep.subr.mxu0 %v627
    %682 = vmatpush1.msra.mxu0 %v626
    %683 = vmatprep.subr.mxu0 0.0
    %684 = vmatpush1.msra.mxu0 0.0
    %685 = vmatprep.subr.mxu0 0.0
    %686 = vmatpush1.msra.mxu0 0.0
    %687 = vmatprep.subr.mxu0 0.0
    %688 = vmatpush1.msra.mxu0 0.0
    %689 = vmatprep.subr.mxu0 0.0
    %690 = vmatpush1.msra.mxu0 0.0
    %691 = vmatprep.subr.mxu0 0.0
    %692 = vmatpush1.msra.mxu0 0.0
    %693 = vmatprep.subr.mxu0 0.0
    %694 = vmatpush1.msra.mxu0 0.0
    %695 = vmatprep.subr.mxu0 0.0
    %696 = vmatpush1.msra.mxu0 0.0
    %697 = vmatprep.subr.mxu0 0.0
    %698 = vmatpush1.msra.mxu0 0.0
    %699 = vmatprep.subr.mxu0 0.0
    %700 = vmatpush1.msra.mxu0 0.0
    %701 = vmatprep.subr.mxu0 0.0
    %702 = vmatpush1.msra.mxu0 0.0
    %703 = vmatprep.subr.mxu0 0.0
    %704 = vmatpush1.msra.mxu0 0.0
    %705 = vmatprep.subr.mxu0 0.0
    %706 = vmatpush1.msra.mxu0 0.0
    %707 = vmatprep.subr.mxu0 0.0
    %708 = vmatpush1.msra.mxu0 0.0
    %709 = vmatprep.subr.mxu0 0.0
    %710 = vmatpush1.msra.mxu0 0.0
    %711 = vmatprep.subr.mxu0 0.0
    %712 = vmatpush1.msra.mxu0 0.0
    %713 = vmatprep.subr.mxu0 0.0
    %714 = vmatpush1.msra.mxu0 0.0
    %715 = vmatprep.subr.mxu0 0.0
    %716 = vmatpush1.msra.mxu0 0.0
    %717 = vmatprep.subr.mxu0 0.0
    %718 = vmatpush1.msra.mxu0 0.0
    %719 = vmatprep.subr.mxu0 0.0
    %720 = vmatpush1.msra.mxu0 0.0
    %721 = vmatprep.subr.mxu0 0.0
    %722 = vmatpush1.msra.mxu0 0.0
    %723 = vmatprep.subr.mxu0 0.0
    %724 = vmatpush1.msra.mxu0 0.0
    %725 = vmatprep.subr.mxu0 0.0
    %726 = vmatpush1.msra.mxu0 0.0
    %727 = vmatprep.subr.mxu0 0.0
    %728 = vmatpush1.msra.mxu0 0.0
    %729 = vmatprep.subr.mxu0 0.0
    %730 = vmatpush1.msra.mxu0 0.0
    %731 = vmatprep.subr.mxu0 0.0
    %732 = vmatpush1.msra.mxu0 0.0
    %733 = vmatprep.subr.mxu0 0.0
    %734 = vmatpush1.msra.mxu0 0.0
    %735 = vmatprep.subr.mxu0 0.0
    %736 = vmatpush1.msra.mxu0 0.0
    %737 = vmatprep.subr.mxu0 0.0
    %738 = vmatpush1.msra.mxu0 0.0
    %739 = vmatprep.mubr.f32.mxu0 0.0
    %740 = vmatmul.mubr.f32.gmra.mrb[0].mxu0 %v664
    %v741 = vpop.f32.mrb[0].mxu0
    %v742 = vadd.f32 %v645, %v741
    %v743 = vpop.f32.mrb[0].mxu0
    %v744 = vadd.f32 %v645, %v743
    %745 = vmatprep.mubr.f32.mxu0 0.0
    %746 = vmatmul.mubr.f32.gmra.mrb[0].mxu0 %v667
    %v747 = vpop.f32.mrb[0].mxu0
    %v748 = vadd.f32 %v650, %v747
    %v749 = vpop.f32.mrb[0].mxu0
    %v750 = vadd.f32 %v650, %v749
    %751 = vmatprep.mubr.f32.mxu0 0.0
    %752 = vmatmul.mubr.f32.gmra.mrb[0].mxu0 %v670
    %v753 = vpop.f32.mrb[0].mxu0
    %v754 = vadd.f32 %v655, %v753
    %v755 = vpop.f32.mrb[0].mxu0
    %v756 = vadd.f32 %v655, %v755
    %757 = vmatprep.mubr.f32.mxu0 0.0
    %758 = vmatmul.mubr.f32.gmra.mrb[0].mxu0 %v673
    %v759 = vpop.f32.mrb[0].mxu0
    %v760 = vadd.f32 %v660, %v759
    %v761 = vpop.f32.mrb[0].mxu0
    %v762 = vadd.f32 %v660, %v761
    %763 = vdwg.mxu0
    %764 = vmatprep.subr.mxu0 %v605
    %765 = vmatpush1.msra.mxu0 %v604
    %766 = vmatprep.subr.mxu0 %v613
    %767 = vmatpush1.msra.mxu0 %v612
    %768 = vmatprep.subr.mxu0 %v621
    %769 = vmatpush1.msra.mxu0 %v620
    %770 = vmatprep.subr.mxu0 %v629
    %771 = vmatpush1.msra.mxu0 %v628
    %772 = vmatprep.subr.mxu0 0.0
    %773 = vmatpush1.msra.mxu0 0.0
    %774 = vmatprep.subr.mxu0 0.0
    %775 = vmatpush1.msra.mxu0 0.0
    %776 = vmatprep.subr.mxu0 0.0
    %777 = vmatpush1.msra.mxu0 0.0
    %778 = vmatprep.subr.mxu0 0.0
    %779 = vmatpush1.msra.mxu0 0.0
    %780 = vmatprep.subr.mxu0 0.0
    %781 = vmatpush1.msra.mxu0 0.0
    %782 = vmatprep.subr.mxu0 0.0
    %783 = vmatpush1.msra.mxu0 0.0
    %784 = vmatprep.subr.mxu0 0.0
    %785 = vmatpush1.msra.mxu0 0.0
    %786 = vmatprep.subr.mxu0 0.0
    %787 = vmatpush1.msra.mxu0 0.0
    %788 = vmatprep.subr.mxu0 0.0
    %789 = vmatpush1.msra.mxu0 0.0
    %790 = vmatprep.subr.mxu0 0.0
    %791 = vmatpush1.msra.mxu0 0.0
    %792 = vmatprep.subr.mxu0 0.0
    %793 = vmatpush1.msra.mxu0 0.0
    %794 = vmatprep.subr.mxu0 0.0
    %795 = vmatpush1.msra.mxu0 0.0
    %796 = vmatprep.subr.mxu0 0.0
    %797 = vmatpush1.msra.mxu0 0.0
    %798 = vmatprep.subr.mxu0 0.0
    %799 = vmatpush1.msra.mxu0 0.0
    %800 = vmatprep.subr.mxu0 0.0
    %801 = vmatpush1.msra.mxu0 0.0
    %802 = vmatprep.subr.mxu0 0.0
    %803 = vmatpush1.msra.mxu0 0.0
    %804 = vmatprep.subr.mxu0 0.0
    %805 = vmatpush1.msra.mxu0 0.0
    %806 = vmatprep.subr.mxu0 0.0
    %807 = vmatpush1.msra.mxu0 0.0
    %808 = vmatprep.subr.mxu0 0.0
    %809 = vmatpush1.msra.mxu0 0.0
    %810 = vmatprep.subr.mxu0 0.0
    %811 = vmatpush1.msra.mxu0 0.0
    %812 = vmatprep.subr.mxu0 0.0
    %813 = vmatpush1.msra.mxu0 0.0
    %814 = vmatprep.subr.mxu0 0.0
    %815 = vmatpush1.msra.mxu0 0.0
    %816 = vmatprep.subr.mxu0 0.0
    %817 = vmatpush1.msra.mxu0 0.0
    %818 = vmatprep.subr.mxu0 0.0
    %819 = vmatpush1.msra.mxu0 0.0
    %820 = vmatprep.subr.mxu0 0.0
    %821 = vmatpush1.msra.mxu0 0.0
    %822 = vmatprep.subr.mxu0 0.0
    %823 = vmatpush1.msra.mxu0 0.0
    %824 = vmatprep.subr.mxu0 0.0
    %825 = vmatpush1.msra.mxu0 0.0
    %826 = vmatprep.subr.mxu0 0.0
    %827 = vmatpush1.msra.mxu0 0.0
    %828 = vmatprep.mubr.f32.mxu0 0.0
    %829 = vmatmul.mubr.f32.gmra.mrb[0].mxu0 %v664
    %v830 = vpop.f32.mrb[0].mxu0
    %v831 = vadd.f32 %v645, %v830
    %v832 = vpop.f32.mrb[0].mxu0
    %v833 = vadd.f32 %v645, %v832
    %834 = vmatprep.mubr.f32.mxu0 0.0
    %835 = vmatmul.mubr.f32.gmra.mrb[0].mxu0 %v667
    %v836 = vpop.f32.mrb[0].mxu0
    %v837 = vadd.f32 %v650, %v836
    %v838 = vpop.f32.mrb[0].mxu0
    %v839 = vadd.f32 %v650, %v838
    %840 = vmatprep.mubr.f32.mxu0 0.0
    %841 = vmatmul.mubr.f32.gmra.mrb[0].mxu0 %v670
    %v842 = vpop.f32.mrb[0].mxu0
    %v843 = vadd.f32 %v655, %v842
    %v844 = vpop.f32.mrb[0].mxu0
    %v845 = vadd.f32 %v655, %v844
    %846 = vmatprep.mubr.f32.mxu0 0.0
    %847 = vmatmul.mubr.f32.gmra.mrb[0].mxu0 %v673
    %v848 = vpop.f32.mrb[0].mxu0
    %v849 = vadd.f32 %v660, %v848
    %v850 = vpop.f32.mrb[0].mxu0
    %v851 = vadd.f32 %v660, %v850
    %852 = vdwg.mxu0
    %853 = vmatprep.subr.mxu0 %v607
    %854 = vmatpush1.msra.mxu0 %v606
    %855 = vmatprep.subr.mxu0 %v615
    %856 = vmatpush1.msra.mxu0 %v614
    %857 = vmatprep.subr.mxu0 %v623
    %858 = vmatpush1.msra.mxu0 %v622
    %859 = vmatprep.subr.mxu0 %v631
    %860 = vmatpush1.msra.mxu0 %v630
    %861 = vmatprep.subr.mxu0 0.0
    %862 = vmatpush1.msra.mxu0 0.0
    %863 = vmatprep.subr.mxu0 0.0
    %864 = vmatpush1.msra.mxu0 0.0
    %865 = vmatprep.subr.mxu0 0.0
    %866 = vmatpush1.msra.mxu0 0.0
    %867 = vmatprep.subr.mxu0 0.0
    %868 = vmatpush1.msra.mxu0 0.0
    %869 = vmatprep.subr.mxu0 0.0
    %870 = vmatpush1.msra.mxu0 0.0
    %871 = vmatprep.subr.mxu0 0.0
    %872 = vmatpush1.msra.mxu0 0.0
    %873 = vmatprep.subr.mxu0 0.0
    %874 = vmatpush1.msra.mxu0 0.0
    %875 = vmatprep.subr.mxu0 0.0
    %876 = vmatpush1.msra.mxu0 0.0
    %877 = vmatprep.subr.mxu0 0.0
    %878 = vmatpush1.msra.mxu0 0.0
    %879 = vmatprep.subr.mxu0 0.0
    %880 = vmatpush1.msra.mxu0 0.0
    %881 = vmatprep.subr.mxu0 0.0
    %882 = vmatpush1.msra.mxu0 0.0
    %883 = vmatprep.subr.mxu0 0.0
    %884 = vmatpush1.msra.mxu0 0.0
    %885 = vmatprep.subr.mxu0 0.0
    %886 = vmatpush1.msra.mxu0 0.0
    %887 = vmatprep.subr.mxu0 0.0
    %888 = vmatpush1.msra.mxu0 0.0
    %889 = vmatprep.subr.mxu0 0.0
    %890 = vmatpush1.msra.mxu0 0.0
    %891 = vmatprep.subr.mxu0 0.0
    %892 = vmatpush1.msra.mxu0 0.0
    %893 = vmatprep.subr.mxu0 0.0
    %894 = vmatpush1.msra.mxu0 0.0
    %895 = vmatprep.subr.mxu0 0.0
    %896 = vmatpush1.msra.mxu0 0.0
    %897 = vmatprep.subr.mxu0 0.0
    %898 = vmatpush1.msra.mxu0 0.0
    %899 = vmatprep.subr.mxu0 0.0
    %900 = vmatpush1.msra.mxu0 0.0
    %901 = vmatprep.subr.mxu0 0.0
    %902 = vmatpush1.msra.mxu0 0.0
    %903 = vmatprep.subr.mxu0 0.0
    %904 = vmatpush1.msra.mxu0 0.0
    %905 = vmatprep.subr.mxu0 0.0
    %906 = vmatpush1.msra.mxu0 0.0
    %907 = vmatprep.subr.mxu0 0.0
    %908 = vmatpush1.msra.mxu0 0.0
    %909 = vmatprep.subr.mxu0 0.0
    %910 = vmatpush1.msra.mxu0 0.0
    %911 = vmatprep.subr.mxu0 0.0
    %912 = vmatpush1.msra.mxu0 0.0
    %913 = vmatprep.subr.mxu0 0.0
    %914 = vmatpush1.msra.mxu0 0.0
    %915 = vmatprep.subr.mxu0 0.0
    %916 = vmatpush1.msra.mxu0 0.0
    %917 = vmatprep.mubr.f32.mxu0 0.0
    %918 = vmatmul.mubr.f32.gmra.mrb[0].mxu0 %v664
    %v919 = vpop.f32.mrb[0].mxu0
    %v920 = vadd.f32 %v645, %v919
    %v921 = vpop.f32.mrb[0].mxu0
    %v922 = vadd.f32 %v645, %v921
    %923 = vmatprep.mubr.f32.mxu0 0.0
    %924 = vmatmul.mubr.f32.gmra.mrb[0].mxu0 %v667
    %v925 = vpop.f32.mrb[0].mxu0
    %v926 = vadd.f32 %v650, %v925
    %v927 = vpop.f32.mrb[0].mxu0
    %v928 = vadd.f32 %v650, %v927
    %929 = vmatprep.mubr.f32.mxu0 0.0
    %930 = vmatmul.mubr.f32.gmra.mrb[0].mxu0 %v670
    %v931 = vpop.f32.mrb[0].mxu0
    %v932 = vadd.f32 %v655, %v931
    %v933 = vpop.f32.mrb[0].mxu0
    %v934 = vadd.f32 %v655, %v933
    %935 = vmatprep.mubr.f32.mxu0 0.0
    %936 = vmatmul.mubr.f32.gmra.mrb[0].mxu0 %v673
    %v937 = vpop.f32.mrb[0].mxu0
    %v938 = vadd.f32 %v660, %v937
    %v939 = vpop.f32.mrb[0].mxu0
    %v940 = vadd.f32 %v660, %v939
    %941 = vdwg.mxu0
    %942 = vmatprep.subr.mxu0 %v609
    %943 = vmatpush1.msra.mxu0 %v608
    %944 = vmatprep.subr.mxu0 %v617
    %945 = vmatpush1.msra.mxu0 %v616
    %946 = vmatprep.subr.mxu0 %v625
    %947 = vmatpush1.msra.mxu0 %v624
    %948 = vmatprep.subr.mxu0 %v633
    %949 = vmatpush1.msra.mxu0 %v632
    %950 = vmatprep.subr.mxu0 0.0
    %951 = vmatpush1.msra.mxu0 0.0
    %952 = vmatprep.subr.mxu0 0.0
    %953 = vmatpush1.msra.mxu0 0.0
    %954 = vmatprep.subr.mxu0 0.0
    %955 = vmatpush1.msra.mxu0 0.0
    %956 = vmatprep.subr.mxu0 0.0
    %957 = vmatpush1.msra.mxu0 0.0
    %958 = vmatprep.subr.mxu0 0.0
    %959 = vmatpush1.msra.mxu0 0.0
    %960 = vmatprep.subr.mxu0 0.0
    %961 = vmatpush1.msra.mxu0 0.0
    %962 = vmatprep.subr.mxu0 0.0
    %963 = vmatpush1.msra.mxu0 0.0
    %964 = vmatprep.subr.mxu0 0.0
    %965 = vmatpush1.msra.mxu0 0.0
    %966 = vmatprep.subr.mxu0 0.0
    %967 = vmatpush1.msra.mxu0 0.0
    %968 = vmatprep.subr.mxu0 0.0
    %969 = vmatpush1.msra.mxu0 0.0
    %970 = vmatprep.subr.mxu0 0.0
    %971 = vmatpush1.msra.mxu0 0.0
    %972 = vmatprep.subr.mxu0 0.0
    %973 = vmatpush1.msra.mxu0 0.0
    %974 = vmatprep.subr.mxu0 0.0
    %975 = vmatpush1.msra.mxu0 0.0
    %976 = vmatprep.subr.mxu0 0.0
    %977 = vmatpush1.msra.mxu0 0.0
    %978 = vmatprep.subr.mxu0 0.0
    %979 = vmatpush1.msra.mxu0 0.0
    %980 = vmatprep.subr.mxu0 0.0
    %981 = vmatpush1.msra.mxu0 0.0
    %982 = vmatprep.subr.mxu0 0.0
    %983 = vmatpush1.msra.mxu0 0.0
    %984 = vmatprep.subr.mxu0 0.0
    %985 = vmatpush1.msra.mxu0 0.0
    %986 = vmatprep.subr.mxu0 0.0
    %987 = vmatpush1.msra.mxu0 0.0
    %988 = vmatprep.subr.mxu0 0.0
    %989 = vmatpush1.msra.mxu0 0.0
    %990 = vmatprep.subr.mxu0 0.0
    %991 = vmatpush1.msra.mxu0 0.0
    %992 = vmatprep.subr.mxu0 0.0
    %993 = vmatpush1.msra.mxu0 0.0
    %994 = vmatprep.subr.mxu0 0.0
    %995 = vmatpush1.msra.mxu0 0.0
    %996 = vmatprep.subr.mxu0 0.0
    %997 = vmatpush1.msra.mxu0 0.0
    %998 = vmatprep.subr.mxu0 0.0
    %999 = vmatpush1.msra.mxu0 0.0
    %1000 = vmatprep.subr.mxu0 0.0
    %1001 = vmatpush1.msra.mxu0 0.0
    %1002 = vmatprep.subr.mxu0 0.0
    %1003 = vmatpush1.msra.mxu0 0.0
    %1004 = vmatprep.subr.mxu0 0.0
    %1005 = vmatpush1.msra.mxu0 0.0
    %1006 = vmatprep.mubr.f32.mxu0 0.0
    %1007 = vmatmul.mubr.f32.gmra.mrb[0].mxu0 %v664
    %v1008 = vpop.f32.mrb[0].mxu0
    %v1009 = vadd.f32 %v645, %v1008
    %v1010 = vpop.f32.mrb[0].mxu0
    %v1011 = vadd.f32 %v645, %v1010
    %1012 = vmatprep.mubr.f32.mxu0 0.0
    %1013 = vmatmul.mubr.f32.gmra.mrb[0].mxu0 %v667
    %v1014 = vpop.f32.mrb[0].mxu0
    %v1015 = vadd.f32 %v650, %v1014
    %v1016 = vpop.f32.mrb[0].mxu0
    %v1017 = vadd.f32 %v650, %v1016
    %1018 = vmatprep.mubr.f32.mxu0 0.0
    %1019 = vmatmul.mubr.f32.gmra.mrb[0].mxu0 %v670
    %v1020 = vpop.f32.mrb[0].mxu0
    %v1021 = vadd.f32 %v655, %v1020
    %v1022 = vpop.f32.mrb[0].mxu0
    %v1023 = vadd.f32 %v655, %v1022
    %1024 = vmatprep.mubr.f32.mxu0 0.0
    %1025 = vmatmul.mubr.f32.gmra.mrb[0].mxu0 %v673
    %v1026 = vpop.f32.mrb[0].mxu0
    %v1027 = vadd.f32 %v660, %v1026
    %v1028 = vpop.f32.mrb[0].mxu0
    %v1029 = vadd.f32 %v660, %v1028
    %1030 = vdwg.mxu0
    %v1031 = vmin.f32 %v742, 0.0
    %v1032 = vmin.f32 %v744, 0.0
    %v1033 = vmin.f32 %v831, 0.0
    %v1034 = vmin.f32 %v833, 0.0
    %v1035 = vmin.f32 %v920, 0.0
    %v1036 = vmin.f32 %v922, 0.0
    %v1037 = vmin.f32 %v1009, 0.0
    %v1038 = vmin.f32 %v1011, 0.0
    %v1039 = vmin.f32 %v748, 0.0
    %v1040 = vmin.f32 %v750, 0.0
    %v1041 = vmin.f32 %v837, 0.0
    %v1042 = vmin.f32 %v839, 0.0
    %v1043 = vmin.f32 %v926, 0.0
    %v1044 = vmin.f32 %v928, 0.0
    %v1045 = vmin.f32 %v1015, 0.0
    %v1046 = vmin.f32 %v1017, 0.0
    %v1047 = vmin.f32 %v754, 0.0
    %v1048 = vmin.f32 %v756, 0.0
    %v1049 = vmin.f32 %v843, 0.0
    %v1050 = vmin.f32 %v845, 0.0
    %v1051 = vmin.f32 %v932, 0.0
    %v1052 = vmin.f32 %v934, 0.0
    %v1053 = vmin.f32 %v1021, 0.0
    %v1054 = vmin.f32 %v1023, 0.0
    %v1055 = vmin.f32 %v760, 0.0
    %v1056 = vmin.f32 %v762, 0.0
    %v1057 = vmin.f32 %v849, 0.0
    %v1058 = vmin.f32 %v851, 0.0
    %v1059 = vmin.f32 %v938, 0.0
    %v1060 = vmin.f32 %v940, 0.0
    %v1061 = vmin.f32 %v1027, 0.0
    %v1062 = vmin.f32 %v1029, 0.0
    %v1063 = vmul.f32 %v1031, 1.442695
    %v1064 = vpow.pop %v1063
    %v1065 = vmul.f32 %v1032, 1.442695
    %v1066 = vpow.pop %v1065
    %v1067 = vmul.f32 %v1033, 1.442695
    %v1068 = vpow.pop %v1067
    %v1069 = vmul.f32 %v1034, 1.442695
    %v1070 = vpow.pop %v1069
    %v1071 = vmul.f32 %v1035, 1.442695
    %v1072 = vpow.pop %v1071
    %v1073 = vmul.f32 %v1036, 1.442695
    %v1074 = vpow.pop %v1073
    %v1075 = vmul.f32 %v1037, 1.442695
    %v1076 = vpow.pop %v1075
    %v1077 = vmul.f32 %v1038, 1.442695
    %v1078 = vpow.pop %v1077
    %v1079 = vmul.f32 %v1039, 1.442695
    %v1080 = vpow.pop %v1079
    %v1081 = vmul.f32 %v1040, 1.442695
    %v1082 = vpow.pop %v1081
    %v1083 = vmul.f32 %v1041, 1.442695
    %v1084 = vpow.pop %v1083
    %v1085 = vmul.f32 %v1042, 1.442695
    %v1086 = vpow.pop %v1085
    %v1087 = vmul.f32 %v1043, 1.442695
    %v1088 = vpow.pop %v1087
    %v1089 = vmul.f32 %v1044, 1.442695
    %v1090 = vpow.pop %v1089
    %v1091 = vmul.f32 %v1045, 1.442695
    %v1092 = vpow.pop %v1091
    %v1093 = vmul.f32 %v1046, 1.442695
    %v1094 = vpow.pop %v1093
    %v1095 = vmul.f32 %v1047, 1.442695
    %v1096 = vpow.pop %v1095
    %v1097 = vmul.f32 %v1048, 1.442695
    %v1098 = vpow.pop %v1097
    %v1099 = vmul.f32 %v1049, 1.442695
    %v1100 = vpow.pop %v1099
    %v1101 = vmul.f32 %v1050, 1.442695
    %v1102 = vpow.pop %v1101
    %v1103 = vmul.f32 %v1051, 1.442695
    %v1104 = vpow.pop %v1103
    %v1105 = vmul.f32 %v1052, 1.442695
    %v1106 = vpow.pop %v1105
    %v1107 = vmul.f32 %v1053, 1.442695
    %v1108 = vpow.pop %v1107
    %v1109 = vmul.f32 %v1054, 1.442695
    %v1110 = vpow.pop %v1109
    %v1111 = vmul.f32 %v1055, 1.442695
    %v1112 = vpow.pop %v1111
    %v1113 = vmul.f32 %v1056, 1.442695
    %v1114 = vpow.pop %v1113
    %v1115 = vmul.f32 %v1057, 1.442695
    %v1116 = vpow.pop %v1115
    %v1117 = vmul.f32 %v1058, 1.442695
    %v1118 = vpow.pop %v1117
    %v1119 = vmul.f32 %v1059, 1.442695
    %v1120 = vpow.pop %v1119
    %v1121 = vmul.f32 %v1060, 1.442695
    %v1122 = vpow.pop %v1121
    %v1123 = vmul.f32 %v1061, 1.442695
    %v1124 = vpow.pop %v1123
    %v1125 = vmul.f32 %v1062, 1.442695
    %v1126 = vpow.pop %v1125
    %v1127 = vsub.f32 %v1064, 1.0
    %v1128 = vsub.f32 %v1066, 1.0
    %v1129 = vsub.f32 %v1068, 1.0
    %v1130 = vsub.f32 %v1070, 1.0
    %v1131 = vsub.f32 %v1072, 1.0
    %v1132 = vsub.f32 %v1074, 1.0
    %v1133 = vsub.f32 %v1076, 1.0
    %v1134 = vsub.f32 %v1078, 1.0
    %v1135 = vsub.f32 %v1080, 1.0
    %v1136 = vsub.f32 %v1082, 1.0
    %v1137 = vsub.f32 %v1084, 1.0
    %v1138 = vsub.f32 %v1086, 1.0
    %v1139 = vsub.f32 %v1088, 1.0
    %v1140 = vsub.f32 %v1090, 1.0
    %v1141 = vsub.f32 %v1092, 1.0
    %v1142 = vsub.f32 %v1094, 1.0
    %v1143 = vsub.f32 %v1096, 1.0
    %v1144 = vsub.f32 %v1098, 1.0
    %v1145 = vsub.f32 %v1100, 1.0
    %v1146 = vsub.f32 %v1102, 1.0
    %v1147 = vsub.f32 %v1104, 1.0
    %v1148 = vsub.f32 %v1106, 1.0
    %v1149 = vsub.f32 %v1108, 1.0
    %v1150 = vsub.f32 %v1110, 1.0
    %v1151 = vsub.f32 %v1112, 1.0
    %v1152 = vsub.f32 %v1114, 1.0
    %v1153 = vsub.f32 %v1116, 1.0
    %v1154 = vsub.f32 %v1118, 1.0
    %v1155 = vsub.f32 %v1120, 1.0
    %v1156 = vsub.f32 %v1122, 1.0
    %v1157 = vsub.f32 %v1124, 1.0
    %v1158 = vsub.f32 %v1126, 1.0
    %v1159 = vmax.f32 %v742, %v1127
    %v1160 = vmax.f32 %v744, %v1128
    %v1161 = vmax.f32 %v831, %v1129
    %v1162 = vmax.f32 %v833, %v1130
    %v1163 = vmax.f32 %v920, %v1131
    %v1164 = vmax.f32 %v922, %v1132
    %v1165 = vmax.f32 %v1009, %v1133
    %v1166 = vmax.f32 %v1011, %v1134
    %v1167 = vmax.f32 %v748, %v1135
    %v1168 = vmax.f32 %v750, %v1136
    %v1169 = vmax.f32 %v837, %v1137
    %v1170 = vmax.f32 %v839, %v1138
    %v1171 = vmax.f32 %v926, %v1139
    %v1172 = vmax.f32 %v928, %v1140
    %v1173 = vmax.f32 %v1015, %v1141
    %v1174 = vmax.f32 %v1017, %v1142
    %v1175 = vmax.f32 %v754, %v1143
    %v1176 = vmax.f32 %v756, %v1144
    %v1177 = vmax.f32 %v843, %v1145
    %v1178 = vmax.f32 %v845, %v1146
    %v1179 = vmax.f32 %v932, %v1147
    %v1180 = vmax.f32 %v934, %v1148
    %v1181 = vmax.f32 %v1021, %v1149
    %v1182 = vmax.f32 %v1023, %v1150
    %v1183 = vmax.f32 %v760, %v1151
    %v1184 = vmax.f32 %v762, %v1152
    %v1185 = vmax.f32 %v849, %v1153
    %v1186 = vmax.f32 %v851, %v1154
    %v1187 = vmax.f32 %v938, %v1155
    %v1188 = vmax.f32 %v940, %v1156
    %v1189 = vmax.f32 %v1027, %v1157
    %v1190 = vmax.f32 %v1029, %v1158
    %v1191 = vld [vmem:[%s8] sm:$0xff]
    %v1192 = vld [vmem:[%s8 + $0x8] sm:$0xff]
    %v1193 = vld [vmem:[%s8 + $0x10] sm:$0xff]
    %v1194 = vld [vmem:[%s8 + $0x18] sm:$0xff]
    %1196 = vset.pattern.permute.xlu0 0
    %1197 = vperm.xlu0 %1196, %v1191
    %v1198 = vpop.permute.xlu0 %1197
    %1201 = vset.pattern.permute.xlu0 0
    %1202 = vperm.xlu0 %1201, %v1192
    %v1203 = vpop.permute.xlu0 %1202
    %1206 = vset.pattern.permute.xlu0 0
    %1207 = vperm.xlu0 %1206, %v1193
    %v1208 = vpop.permute.xlu0 %1207
    %1211 = vset.pattern.permute.xlu0 0
    %1212 = vperm.xlu0 %1211, %v1194
    %v1213 = vpop.permute.xlu0 %1212
    %v1215 = vmul.f32 %v1198, %v1159
    %v1216 = vmul.f32 %v1198, %v1160
    %v1217 = vmul.f32 %v1198, %v1161
    %v1218 = vmul.f32 %v1198, %v1162
    %v1219 = vmul.f32 %v1198, %v1163
    %v1220 = vmul.f32 %v1198, %v1164
    %v1221 = vmul.f32 %v1198, %v1165
    %v1222 = vmul.f32 %v1198, %v1166
    %v1223 = vmul.f32 %v1203, %v1167
    %v1224 = vmul.f32 %v1203, %v1168
    %v1225 = vmul.f32 %v1203, %v1169
    %v1226 = vmul.f32 %v1203, %v1170
    %v1227 = vmul.f32 %v1203, %v1171
    %v1228 = vmul.f32 %v1203, %v1172
    %v1229 = vmul.f32 %v1203, %v1173
    %v1230 = vmul.f32 %v1203, %v1174
    %v1231 = vmul.f32 %v1208, %v1175
    %v1232 = vmul.f32 %v1208, %v1176
    %v1233 = vmul.f32 %v1208, %v1177
    %v1234 = vmul.f32 %v1208, %v1178
    %v1235 = vmul.f32 %v1208, %v1179
    %v1236 = vmul.f32 %v1208, %v1180
    %v1237 = vmul.f32 %v1208, %v1181
    %v1238 = vmul.f32 %v1208, %v1182
    %v1239 = vmul.f32 %v1213, %v1183
    %v1240 = vmul.f32 %v1213, %v1184
    %v1241 = vmul.f32 %v1213, %v1185
    %v1242 = vmul.f32 %v1213, %v1186
    %v1243 = vmul.f32 %v1213, %v1187
    %v1244 = vmul.f32 %v1213, %v1188
    %v1245 = vmul.f32 %v1213, %v1189
    %v1246 = vmul.f32 %v1213, %v1190
    %v1247 = vadd.f32 %v1215, %v1223
    %v1248 = vadd.f32 %v1247, %v1231
    %v1249 = vadd.f32 %v1248, %v1239
    %v1250 = vrot.slane %v1249, 4
    %v1251 = vadd.f32 %v1249, %v1250
    %v1252 = vrot.slane %v1251, 2
    %v1253 = vadd.f32 %v1251, %v1252
    %v1254 = vrot.slane %v1253, 1
    %v1255 = vadd.f32 %v1253, %v1254
    %v1256 = vadd.f32 %v1216, %v1224
    %v1257 = vadd.f32 %v1256, %v1232
    %v1258 = vadd.f32 %v1257, %v1240
    %v1259 = vrot.slane %v1258, 4
    %v1260 = vadd.f32 %v1258, %v1259
    %v1261 = vrot.slane %v1260, 2
    %v1262 = vadd.f32 %v1260, %v1261
    %v1263 = vrot.slane %v1262, 1
    %v1264 = vadd.f32 %v1262, %v1263
    %v1265 = vadd.f32 %v1217, %v1225
    %v1266 = vadd.f32 %v1265, %v1233
    %v1267 = vadd.f32 %v1266, %v1241
    %v1268 = vrot.slane %v1267, 4
    %v1269 = vadd.f32 %v1267, %v1268
    %v1270 = vrot.slane %v1269, 2
    %v1271 = vadd.f32 %v1269, %v1270
    %v1272 = vrot.slane %v1271, 1
    %v1273 = vadd.f32 %v1271, %v1272
    %v1274 = vadd.f32 %v1218, %v1226
    %v1275 = vadd.f32 %v1274, %v1234
    %v1276 = vadd.f32 %v1275, %v1242
    %v1277 = vrot.slane %v1276, 4
    %v1278 = vadd.f32 %v1276, %v1277
    %v1279 = vrot.slane %v1278, 2
    %v1280 = vadd.f32 %v1278, %v1279
    %v1281 = vrot.slane %v1280, 1
    %v1282 = vadd.f32 %v1280, %v1281
    %v1283 = vadd.f32 %v1219, %v1227
    %v1284 = vadd.f32 %v1283, %v1235
    %v1285 = vadd.f32 %v1284, %v1243
    %v1286 = vrot.slane %v1285, 4
    %v1287 = vadd.f32 %v1285, %v1286
    %v1288 = vrot.slane %v1287, 2
    %v1289 = vadd.f32 %v1287, %v1288
    %v1290 = vrot.slane %v1289, 1
    %v1291 = vadd.f32 %v1289, %v1290
    %v1292 = vadd.f32 %v1220, %v1228
    %v1293 = vadd.f32 %v1292, %v1236
    %v1294 = vadd.f32 %v1293, %v1244
    %v1295 = vrot.slane %v1294, 4
    %v1296 = vadd.f32 %v1294, %v1295
    %v1297 = vrot.slane %v1296, 2
    %v1298 = vadd.f32 %v1296, %v1297
    %v1299 = vrot.slane %v1298, 1
    %v1300 = vadd.f32 %v1298, %v1299
    %v1301 = vadd.f32 %v1221, %v1229
    %v1302 = vadd.f32 %v1301, %v1237
    %v1303 = vadd.f32 %v1302, %v1245
    %v1304 = vrot.slane %v1303, 4
    %v1305 = vadd.f32 %v1303, %v1304
    %v1306 = vrot.slane %v1305, 2
    %v1307 = vadd.f32 %v1305, %v1306
    %v1308 = vrot.slane %v1307, 1
    %v1309 = vadd.f32 %v1307, %v1308
    %v1310 = vadd.f32 %v1222, %v1230
    %v1311 = vadd.f32 %v1310, %v1238
    %v1312 = vadd.f32 %v1311, %v1246
    %v1313 = vrot.slane %v1312, 4
    %v1314 = vadd.f32 %v1312, %v1313
    %v1315 = vrot.slane %v1314, 2
    %v1316 = vadd.f32 %v1314, %v1315
    %v1317 = vrot.slane %v1316, 1
    %v1318 = vadd.f32 %v1316, %v1317
    %v1319 = vld [vmem:[#allocation3] sm:$0x1]
    %1321 = vset.pattern.permute.xlu0 0
    %1322 = vperm.xlu0 %1321, %v1319
    %v1323 = vpop.permute.xlu0 %1322
    %v1325 = vlaneseq
    %v1326 = vshrl.u32 %v1325, 7
    %v1327 = vsub.s32 0, %v1326
    %v1328 = vrot.slane %v1323, %v1327
    %v1329 = vadd.f32 %v1255, %v1328
    %v1330 = vadd.f32 %v1264, %v1328
    %v1331 = vadd.f32 %v1273, %v1328
    %v1332 = vadd.f32 %v1282, %v1328
    %v1333 = vadd.f32 %v1291, %v1328
    %v1334 = vadd.f32 %v1300, %v1328
    %v1335 = vadd.f32 %v1309, %v1328
    %v1336 = vadd.f32 %v1318, %v1328
    %v1337 = vmin.f32 %v1329, 0.0
    %v1338 = vmin.f32 %v1330, 0.0
    %v1339 = vmin.f32 %v1331, 0.0
    %v1340 = vmin.f32 %v1332, 0.0
    %v1341 = vmin.f32 %v1333, 0.0
    %v1342 = vmin.f32 %v1334, 0.0
    %v1343 = vmin.f32 %v1335, 0.0
    %v1344 = vmin.f32 %v1336, 0.0
    %v1345 = vmul.f32 %v1337, 1.442695
    %v1346 = vpow.pop %v1345
    %v1347 = vmul.f32 %v1338, 1.442695
    %v1348 = vpow.pop %v1347
    %v1349 = vmul.f32 %v1339, 1.442695
    %v1350 = vpow.pop %v1349
    %v1351 = vmul.f32 %v1340, 1.442695
    %v1352 = vpow.pop %v1351
    %v1353 = vmul.f32 %v1341, 1.442695
    %v1354 = vpow.pop %v1353
    %v1355 = vmul.f32 %v1342, 1.442695
    %v1356 = vpow.pop %v1355
    %v1357 = vmul.f32 %v1343, 1.442695
    %v1358 = vpow.pop %v1357
    %v1359 = vmul.f32 %v1344, 1.442695
    %v1360 = vpow.pop %v1359
    %v1361 = vsub.f32 %v1346, 1.0
    %v1362 = vsub.f32 %v1348, 1.0
    %v1363 = vsub.f32 %v1350, 1.0
    %v1364 = vsub.f32 %v1352, 1.0
    %v1365 = vsub.f32 %v1354, 1.0
    %v1366 = vsub.f32 %v1356, 1.0
    %v1367 = vsub.f32 %v1358, 1.0
    %v1368 = vsub.f32 %v1360, 1.0
    %v1369 = vmax.f32 %v1329, %v1361
    %v1370 = vmax.f32 %v1330, %v1362
    %v1371 = vmax.f32 %v1331, %v1363
    %v1372 = vmax.f32 %v1332, %v1364
    %v1373 = vmax.f32 %v1333, %v1365
    %v1374 = vmax.f32 %v1334, %v1366
    %v1375 = vmax.f32 %v1335, %v1367
    %v1376 = vmax.f32 %v1336, %v1368
    %s1377 = sld [smem:[#allocation2]]
    %v1378 = vstv %s1377
    %v1379 = vmul.f32 %v1369, %v1378
    %v1380 = vmul.f32 %v1370, %v1378
    %v1381 = vmul.f32 %v1371, %v1378
    %v1382 = vmul.f32 %v1372, %v1378
    %v1383 = vmul.f32 %v1373, %v1378
    %v1384 = vmul.f32 %v1374, %v1378
    %v1385 = vmul.f32 %v1375, %v1378
    %v1386 = vmul.f32 %v1376, %v1378
    %v1395 = vcombine.low %v1379, %v1380
    %v1396 = vcombine.low %v1381, %v1382
    %v1397 = vcombine.low %v1383, %v1384
    %v1398 = vcombine.low %v1385, %v1386
    %v1400 = vunpack.c.l.s4 1966171168
    %v1401 = vunpack.c.0.s8 %v1400
    %v1402 = vlaneseq
    %v1403 = vshrl.u32 %v1402, 7
    %v1404 = vsub.s32 %v1401, %v1403
    %v1405 = vrot.slane %v1395, %v1404
    %v1407 = vunpack.c.l.s4 1966171168
    %v1408 = vunpack.c.0.s8 %v1407
    %v1409 = vlaneseq
    %v1410 = vshrl.u32 %v1409, 7
    %v1411 = vsub.s32 %v1408, %v1410
    %v1412 = vrot.slane %v1396, %v1411
    %v1414 = vunpack.c.l.s4 1966171168
    %v1415 = vunpack.c.0.s8 %v1414
    %v1416 = vlaneseq
    %v1417 = vshrl.u32 %v1416, 7
    %v1418 = vsub.s32 %v1415, %v1417
    %v1419 = vrot.slane %v1397, %v1418
    %v1421 = vunpack.c.l.s4 1966171168
    %v1422 = vunpack.c.0.s8 %v1421
    %v1423 = vlaneseq
    %v1424 = vshrl.u32 %v1423, 7
    %v1425 = vsub.s32 %v1422, %v1424
    %v1426 = vrot.slane %v1398, %v1425
    %v1427 = vcombine.low %v1405, %v1412
    %v1428 = vcombine.low %v1419, %v1426
    %v1430 = vunpack.c.l.s4 1966171168
    %v1431 = vunpack.c.0.s8 %v1430
    %v1432 = vlaneseq
    %v1433 = vshrl.u32 %v1432, 7
    %v1434 = vsub.s32 %v1431, %v1433
    %v1435 = vrot.slane %v1427, %v1434
    %v1437 = vunpack.c.l.s4 1966171168
    %v1438 = vunpack.c.0.s8 %v1437
    %v1439 = vlaneseq
    %v1440 = vshrl.u32 %v1439, 7
    %v1441 = vsub.s32 %v1438, %v1440
    %v1442 = vrot.slane %v1428, %v1441
    %v1443 = vcombine.low %v1435, %v1442
    %1445 = vst [vmem:[#allocation4] sm:$0xff] %v1443
    // Predicated region
    $region42: #{ml_density_functional.1} parent=1 // pred_check
      _
    $region43: #{ml_density_functional.1} parent=1 // pred_check_branch
      %1447 = sbr.rel (0) target = $region45
    $region44: #{ml_density_functional.1} parent=1 // pred_region
      %s1449 = ssub.s32 128, 128
      %1450 = vsyncadd [#allocation5], %s1449
      %s1452 = sshll.u32 [#allocation4], 4
      %s1453 = int_to_ptr.vmem [resolvable:$true] %s1452
      %1455 = dma.vmem_to_hbm [thread:$0]  %s1453, 128, %s10, [#allocation5]
    $region45: #{ml_density_functional.1} parent=1 // pred_fallthru
      _
    // Predicated region
    $region46: #{ml_density_functional.1} parent=1 // pred_check
      _
    $region47: #{ml_density_functional.1} parent=1 // pred_check_branch
      %1457 = sbr.rel (0) target = $region49
    $region48: #{ml_density_functional.1} parent=1 // pred_region
      %1458 = dma.done [#allocation5], 128
    $region49: #{ml_density_functional.1} parent=1 // pred_fallthru
      _
    %1459 = vsyncpa [#allocation5], 1

</llo_original>
